<compile_context>
chip_gen: v6e
topology: v6e:2x2x1
jax: 0.10.0
libtpu: 0.0.40
codegen_flags: <defaults>
</compile_context>

<pallas_src>
import functools
import math

import jax
import jax.numpy as jnp
from jax import lax
from jax.experimental import pallas as pl
from jax.experimental.pallas import tpu as pltpu


def _round_up(x, m):
    return (x + m - 1) // m * m


def merge_block_kernel(x_ref, w_ref, b_ref, g_ref, beta_ref, o_ref, *,
                       th, w_out, c_in, c_out, eps):
    # x_ref:    (4, Hs, Ws, C)     space-to-depth padded image (bf16), parity-major
    #                              x_ref[hp*2+wp, hs, ws, :] == x_pad[2*hs+hp, 2*ws+wp, :]
    # w_ref:    (9, C, Coutp)      conv weight per tap (bf16, zero-padded cols)
    # b_ref:    (1, Coutp)         conv bias  (f32, zero-padded)
    # g_ref:    (1, Coutp)         LN gamma   (f32, zero-padded)
    # beta_ref: (1, Coutp)         LN beta    (f32, zero-padded)
    # o_ref:    (th*w_out, Coutp)  output tile (f32)
    t = pl.program_id(1)
    row0 = t * th
    coutp = o_ref.shape[-1]

    acc = jnp.zeros((th * w_out, coutp), jnp.float32)

    # Implicit GEMM: 9 shifted taps of the space-to-depth image, each a
    # (th*w_out, C) x (C, Coutp) bf16 matmul accumulated in f32 on the MXU.
    for kh in range(3):
        dh, hp = kh // 2, kh % 2
        for kw in range(3):
            dw, wp = kw // 2, kw % 2
            p = hp * 2 + wp
            tap = x_ref[p, pl.ds(row0 + dh, th), dw:dw + w_out, :]
            tap2d = tap.reshape(th * w_out, c_in)
            acc += jnp.dot(tap2d, w_ref[kh * 3 + kw],
                           preferred_element_type=jnp.float32)

    # Conv bias, then LayerNorm over the true c_out channels (padded lanes of
    # acc/bias are exactly zero, so full-width sums divided by c_out are exact).
    y = acc + b_ref[...]
    inv_c = 1.0 / c_out
    mean = jnp.sum(y, axis=-1, keepdims=True) * inv_c
    msq = jnp.sum(y * y, axis=-1, keepdims=True) * inv_c
    var = msq - mean * mean
    scale = lax.rsqrt(var + eps) * g_ref[...]          # padded gamma = 0 -> pad lanes stay 0
    o_ref[...] = ((y - mean) * scale + beta_ref[...]).astype(o_ref.dtype)


def merge_block_forward(x, conv_w, conv_b, ln_g, ln_b, *, target_rows=512, eps=1e-5):
    """x: (B, H*W, C) float32. Returns (B, (H//2)*(W//2), C_out) float32."""
    B, HW, C = x.shape
    H = W = int(math.isqrt(HW))
    assert H * W == HW, "sequence length must be a perfect square"
    # TODO(synk): odd H/W (stride-2 conv with uneven halo) is not handled here;
    # CSWin merge stages always have even spatial sizes.
    assert H % 2 == 0 and W % 2 == 0, "spatial size must be even"
    C_out = conv_w.shape[0]

    H_out, W_out = H // 2, W // 2
    Hs, Ws = H_out + 1, W_out + 1
    C_outp = _round_up(C_out, 128)           # lane-dense output stores

    # ---- glue (single pass over the input, bf16): pad + space-to-depth ----
    xb = x.astype(jnp.bfloat16).reshape(B, H, W, C)
    xp = jnp.pad(xb, ((0, 0), (1, 1), (1, 1), (0, 0)))
    # (B, 2*Hs, 2*Ws, C) -> (B, hp, wp, Hs, Ws, C) -> (B*4, Hs, Ws, C)
    s2d = xp.reshape(B, Hs, 2, Ws, 2, C).transpose(0, 2, 4, 1, 3, 5)
    s2d = s2d.reshape(B * 4, Hs, Ws, C)

    # conv weight (C_out, C, 3, 3) -> (9, C, C_outp) bf16, zero-padded output cols
    w = jnp.transpose(conv_w, (2, 3, 1, 0)).reshape(9, C, C_out).astype(jnp.bfloat16)
    w = jnp.pad(w, ((0, 0), (0, 0), (0, C_outp - C_out)))
    b_row = jnp.pad(conv_b.astype(jnp.float32), (0, C_outp - C_out)).reshape(1, C_outp)
    g_row = jnp.pad(ln_g.astype(jnp.float32), (0, C_outp - C_out)).reshape(1, C_outp)
    beta_row = jnp.pad(ln_b.astype(jnp.float32), (0, C_outp - C_out)).reshape(1, C_outp)

    # Output-row tile: whole output rows, largest divisor of H_out whose token
    # count is <= target_rows and a multiple of 8 (sublane-aligned stores).
    th = H_out
    for d in range(H_out, 0, -1):
        if H_out % d == 0 and d * W_out <= target_rows and (d * W_out) % 8 == 0:
            th = d
            break
    n_t = H_out // th
    TR = th * W_out

    kernel = functools.partial(
        merge_block_kernel, th=th, w_out=W_out, c_in=C, c_out=C_out, eps=eps)

    out = pl.pallas_call(
        kernel,
        out_shape=jax.ShapeDtypeStruct((B, H_out * W_out, C_outp), jnp.float32),
        grid_spec=pltpu.PrefetchScalarGridSpec(
            num_scalar_prefetch=0,
            grid=(B, n_t),
            in_specs=[
                # full space-to-depth image of batch b; constant along the row-tile
                # axis, so it stays resident in VMEM across row tiles.
                pl.BlockSpec((4, Hs, Ws, C), lambda b, t: (b, 0, 0, 0)),
                pl.BlockSpec((9, C, C_outp), lambda b, t: (0, 0, 0)),   # weights (full)
                pl.BlockSpec((1, C_outp), lambda b, t: (0, 0)),         # conv bias
                pl.BlockSpec((1, C_outp), lambda b, t: (0, 0)),         # LN gamma
                pl.BlockSpec((1, C_outp), lambda b, t: (0, 0)),         # LN beta
            ],
            out_specs=pl.BlockSpec((None, TR, C_outp), lambda b, t: (b, t, 0)),
        ),
        compiler_params=pltpu.CompilerParams(
            dimension_semantics=("parallel", "parallel")),
    )(s2d, w, b_row, g_row, beta_row)

    return out[:, :, :C_out]


def reference_forward(x, conv_w, conv_b, ln_g, ln_b, eps=1e-5):
    """Plain-JAX reference (mirrors the PyTorch module) for validation."""
    B, HW, C = x.shape
    H = W = int(math.isqrt(HW))
    x_nchw = jnp.transpose(x, (0, 2, 1)).reshape(B, C, H, W)
    y = lax.conv_general_dilated(
        x_nchw, conv_w, window_strides=(2, 2), padding=((1, 1), (1, 1)),
        dimension_numbers=("NCHW", "OIHW", "NCHW"),
        precision=lax.Precision.HIGHEST)
    y = y + conv_b.reshape(1, -1, 1, 1)
    B2, C2 = y.shape[:2]
    y = jnp.transpose(y.reshape(B2, C2, -1), (0, 2, 1))
    mean = jnp.mean(y, axis=-1, keepdims=True)
    var = jnp.mean((y - mean) ** 2, axis=-1, keepdims=True)
    return (y - mean) / jnp.sqrt(var + eps) * ln_g + ln_b


if __name__ == "__main__":
    key = jax.random.PRNGKey(0)
    k_x, k_w, k_b, k_g, k_beta = jax.random.split(key, 5)

    B, H, W, dim, dim_out = 2, 16, 16, 4, 8
    x = jax.random.normal(k_x, (B, H * W, dim), dtype=jnp.float32)

    # deterministic synthetic params: Conv2d(dim, dim_out, 3, 2, 1) + LayerNorm(dim_out)
    fan_in = dim * 3 * 3
    bound = 1.0 / math.sqrt(fan_in)
    conv_w = jax.random.uniform(k_w, (dim_out, dim, 3, 3), jnp.float32, -bound, bound)
    conv_b = jax.random.uniform(k_b, (dim_out,), jnp.float32, -bound, bound)
    ln_g = jnp.ones((dim_out,), jnp.float32) + 0.01 * jax.random.normal(k_g, (dim_out,))
    ln_b = 0.01 * jax.random.normal(k_beta, (dim_out,))

    fwd = jax.jit(merge_block_forward)
    out = jax.block_until_ready(fwd(x, conv_w, conv_b, ln_g, ln_b))
    assert out.shape == (B, (H // 2) * (W // 2), dim_out), out.shape

    # Compare against the f32 reference evaluated on the same bf16-rounded
    # x / conv weight the kernel feeds to the MXU (bf16 products are exact in
    # f32), isolating kernel correctness from bf16 input quantization.
    x_q = x.astype(jnp.bfloat16).astype(jnp.float32)
    w_q = conv_w.astype(jnp.bfloat16).astype(jnp.float32)
    ref = reference_forward(x_q, w_q, conv_b, ln_g, ln_b)
    assert jnp.allclose(out, ref, atol=1e-3, rtol=1e-3), \
        float(jnp.max(jnp.abs(out - ref)))

    print("KERNEL_OK")
</pallas_src>

<mosaic_0001>
module attributes {stable_mosaic.version = 11 : i64} {
  func.func @merge_block_kernel(%arg0: i32, %arg1: i32, %arg2: memref<4x9x9x4xbf16, #tpu.memory_space<vmem>>, %arg3: memref<9x4x128xbf16, #tpu.memory_space<vmem>>, %arg4: memref<1x128xf32, #tpu.memory_space<vmem>>, %arg5: memref<1x128xf32, #tpu.memory_space<vmem>>, %arg6: memref<1x128xf32, #tpu.memory_space<vmem>>, %arg7: memref<1x64x128xf32, #tpu.memory_space<vmem>>) attributes {dimension_semantics = [#tpu.dimension_semantics<parallel>, #tpu.dimension_semantics<parallel>], iteration_bounds = array<i64: 2, 1>, scalar_prefetch = 0 : i64, scratch_operands = 0 : i64, tpu.core_type = #tpu.core_type<tc>, window_params = [{transform_indices = @transform_0, window_bounds = array<i64: 4, 9, 9, 4>}, {pipeline_mode = #tpu.pipeline_mode<synchronous>, transform_indices = @transform_1, window_bounds = array<i64: 9, 4, 128>}, {pipeline_mode = #tpu.pipeline_mode<synchronous>, transform_indices = @transform_2, window_bounds = array<i64: 1, 128>}, {pipeline_mode = #tpu.pipeline_mode<synchronous>, transform_indices = @transform_3, window_bounds = array<i64: 1, 128>}, {pipeline_mode = #tpu.pipeline_mode<synchronous>, transform_indices = @transform_4, window_bounds = array<i64: 1, 128>}, {transform_indices = @transform_5, window_bounds = array<i64: 1, 64, 128>}]} {
    %c8_i32 = arith.constant 8 : i32
    %0 = arith.muli %arg1, %c8_i32 : i32
    %cst = arith.constant 0.000000e+00 : f32
    %1 = vector.broadcast %cst : f32 to vector<64x128xf32>
    %c0_i32 = arith.constant 0 : i32
    %2 = arith.addi %0, %c0_i32 : i32
    %c0 = arith.constant 0 : index
    %3 = arith.index_cast %2 : i32 to index
    %c0_0 = arith.constant 0 : index
    %c0_1 = arith.constant 0 : index
    %4 = vector.load %arg2[%c0, %3, %c0_0, %c0_1] : memref<4x9x9x4xbf16, #tpu.memory_space<vmem>>, vector<1x8x8x4xbf16>
    %5 = vector.shape_cast %4 : vector<1x8x8x4xbf16> to vector<8x8x4xbf16>
    %6 = vector.shape_cast %5 : vector<8x8x4xbf16> to vector<64x4xbf16>
    %c0_2 = arith.constant 0 : index
    %c0_3 = arith.constant 0 : index
    %c0_4 = arith.constant 0 : index
    %7 = vector.load %arg3[%c0_2, %c0_3, %c0_4] : memref<9x4x128xbf16, #tpu.memory_space<vmem>>, vector<1x4x128xbf16>
    %8 = vector.shape_cast %7 : vector<1x4x128xbf16> to vector<4x128xbf16>
    %cst_5 = arith.constant dense<0.000000e+00> : vector<64x128xf32>
    %9 = tpu.matmul %6, %8, %cst_5 {dimension_numbers = #tpu.dot_dimension_numbers<[1], [0], [0], [1], [0, 0, 1, 1], [], []>} : vector<64x4xbf16>, vector<4x128xbf16>, vector<64x128xf32> -> vector<64x128xf32>
    %10 = arith.addf %1, %9 : vector<64x128xf32>
    %c0_i32_6 = arith.constant 0 : i32
    %11 = arith.addi %0, %c0_i32_6 : i32
    %c1 = arith.constant 1 : index
    %12 = arith.index_cast %11 : i32 to index
    %c0_7 = arith.constant 0 : index
    %c0_8 = arith.constant 0 : index
    %13 = vector.load %arg2[%c1, %12, %c0_7, %c0_8] : memref<4x9x9x4xbf16, #tpu.memory_space<vmem>>, vector<1x8x8x4xbf16>
    %14 = vector.shape_cast %13 : vector<1x8x8x4xbf16> to vector<8x8x4xbf16>
    %15 = vector.shape_cast %14 : vector<8x8x4xbf16> to vector<64x4xbf16>
    %c1_9 = arith.constant 1 : index
    %c0_10 = arith.constant 0 : index
    %c0_11 = arith.constant 0 : index
    %16 = vector.load %arg3[%c1_9, %c0_10, %c0_11] : memref<9x4x128xbf16, #tpu.memory_space<vmem>>, vector<1x4x128xbf16>
    %17 = vector.shape_cast %16 : vector<1x4x128xbf16> to vector<4x128xbf16>
    %cst_12 = arith.constant dense<0.000000e+00> : vector<64x128xf32>
    %18 = tpu.matmul %15, %17, %cst_12 {dimension_numbers = #tpu.dot_dimension_numbers<[1], [0], [0], [1], [0, 0, 1, 1], [], []>} : vector<64x4xbf16>, vector<4x128xbf16>, vector<64x128xf32> -> vector<64x128xf32>
    %19 = arith.addf %10, %18 : vector<64x128xf32>
    %c0_i32_13 = arith.constant 0 : i32
    %20 = arith.addi %0, %c0_i32_13 : i32
    %c0_14 = arith.constant 0 : index
    %21 = arith.index_cast %20 : i32 to index
    %c1_15 = arith.constant 1 : index
    %c0_16 = arith.constant 0 : index
    %22 = vector.load %arg2[%c0_14, %21, %c1_15, %c0_16] : memref<4x9x9x4xbf16, #tpu.memory_space<vmem>>, vector<1x8x8x4xbf16>
    %23 = vector.shape_cast %22 : vector<1x8x8x4xbf16> to vector<8x8x4xbf16>
    %24 = vector.shape_cast %23 : vector<8x8x4xbf16> to vector<64x4xbf16>
    %c2 = arith.constant 2 : index
    %c0_17 = arith.constant 0 : index
    %c0_18 = arith.constant 0 : index
    %25 = vector.load %arg3[%c2, %c0_17, %c0_18] : memref<9x4x128xbf16, #tpu.memory_space<vmem>>, vector<1x4x128xbf16>
    %26 = vector.shape_cast %25 : vector<1x4x128xbf16> to vector<4x128xbf16>
    %cst_19 = arith.constant dense<0.000000e+00> : vector<64x128xf32>
    %27 = tpu.matmul %24, %26, %cst_19 {dimension_numbers = #tpu.dot_dimension_numbers<[1], [0], [0], [1], [0, 0, 1, 1], [], []>} : vector<64x4xbf16>, vector<4x128xbf16>, vector<64x128xf32> -> vector<64x128xf32>
    %28 = arith.addf %19, %27 : vector<64x128xf32>
    %c0_i32_20 = arith.constant 0 : i32
    %29 = arith.addi %0, %c0_i32_20 : i32
    %c2_21 = arith.constant 2 : index
    %30 = arith.index_cast %29 : i32 to index
    %c0_22 = arith.constant 0 : index
    %c0_23 = arith.constant 0 : index
    %31 = vector.load %arg2[%c2_21, %30, %c0_22, %c0_23] : memref<4x9x9x4xbf16, #tpu.memory_space<vmem>>, vector<1x8x8x4xbf16>
    %32 = vector.shape_cast %31 : vector<1x8x8x4xbf16> to vector<8x8x4xbf16>
    %33 = vector.shape_cast %32 : vector<8x8x4xbf16> to vector<64x4xbf16>
    %c3 = arith.constant 3 : index
    %c0_24 = arith.constant 0 : index
    %c0_25 = arith.constant 0 : index
    %34 = vector.load %arg3[%c3, %c0_24, %c0_25] : memref<9x4x128xbf16, #tpu.memory_space<vmem>>, vector<1x4x128xbf16>
    %35 = vector.shape_cast %34 : vector<1x4x128xbf16> to vector<4x128xbf16>
    %cst_26 = arith.constant dense<0.000000e+00> : vector<64x128xf32>
    %36 = tpu.matmul %33, %35, %cst_26 {dimension_numbers = #tpu.dot_dimension_numbers<[1], [0], [0], [1], [0, 0, 1, 1], [], []>} : vector<64x4xbf16>, vector<4x128xbf16>, vector<64x128xf32> -> vector<64x128xf32>
    %37 = arith.addf %28, %36 : vector<64x128xf32>
    %c0_i32_27 = arith.constant 0 : i32
    %38 = arith.addi %0, %c0_i32_27 : i32
    %c3_28 = arith.constant 3 : index
    %39 = arith.index_cast %38 : i32 to index
    %c0_29 = arith.constant 0 : index
    %c0_30 = arith.constant 0 : index
    %40 = vector.load %arg2[%c3_28, %39, %c0_29, %c0_30] : memref<4x9x9x4xbf16, #tpu.memory_space<vmem>>, vector<1x8x8x4xbf16>
    %41 = vector.shape_cast %40 : vector<1x8x8x4xbf16> to vector<8x8x4xbf16>
    %42 = vector.shape_cast %41 : vector<8x8x4xbf16> to vector<64x4xbf16>
    %c4 = arith.constant 4 : index
    %c0_31 = arith.constant 0 : index
    %c0_32 = arith.constant 0 : index
    %43 = vector.load %arg3[%c4, %c0_31, %c0_32] : memref<9x4x128xbf16, #tpu.memory_space<vmem>>, vector<1x4x128xbf16>
    %44 = vector.shape_cast %43 : vector<1x4x128xbf16> to vector<4x128xbf16>
    %cst_33 = arith.constant dense<0.000000e+00> : vector<64x128xf32>
    %45 = tpu.matmul %42, %44, %cst_33 {dimension_numbers = #tpu.dot_dimension_numbers<[1], [0], [0], [1], [0, 0, 1, 1], [], []>} : vector<64x4xbf16>, vector<4x128xbf16>, vector<64x128xf32> -> vector<64x128xf32>
    %46 = arith.addf %37, %45 : vector<64x128xf32>
    %c0_i32_34 = arith.constant 0 : i32
    %47 = arith.addi %0, %c0_i32_34 : i32
    %c2_35 = arith.constant 2 : index
    %48 = arith.index_cast %47 : i32 to index
    %c1_36 = arith.constant 1 : index
    %c0_37 = arith.constant 0 : index
    %49 = vector.load %arg2[%c2_35, %48, %c1_36, %c0_37] : memref<4x9x9x4xbf16, #tpu.memory_space<vmem>>, vector<1x8x8x4xbf16>
    %50 = vector.shape_cast %49 : vector<1x8x8x4xbf16> to vector<8x8x4xbf16>
    %51 = vector.shape_cast %50 : vector<8x8x4xbf16> to vector<64x4xbf16>
    %c5 = arith.constant 5 : index
    %c0_38 = arith.constant 0 : index
    %c0_39 = arith.constant 0 : index
    %52 = vector.load %arg3[%c5, %c0_38, %c0_39] : memref<9x4x128xbf16, #tpu.memory_space<vmem>>, vector<1x4x128xbf16>
    %53 = vector.shape_cast %52 : vector<1x4x128xbf16> to vector<4x128xbf16>
    %cst_40 = arith.constant dense<0.000000e+00> : vector<64x128xf32>
    %54 = tpu.matmul %51, %53, %cst_40 {dimension_numbers = #tpu.dot_dimension_numbers<[1], [0], [0], [1], [0, 0, 1, 1], [], []>} : vector<64x4xbf16>, vector<4x128xbf16>, vector<64x128xf32> -> vector<64x128xf32>
    %55 = arith.addf %46, %54 : vector<64x128xf32>
    %c1_i32 = arith.constant 1 : i32
    %56 = arith.addi %0, %c1_i32 : i32
    %c0_41 = arith.constant 0 : index
    %57 = arith.index_cast %56 : i32 to index
    %c0_42 = arith.constant 0 : index
    %c0_43 = arith.constant 0 : index
    %58 = vector.load %arg2[%c0_41, %57, %c0_42, %c0_43] : memref<4x9x9x4xbf16, #tpu.memory_space<vmem>>, vector<1x8x8x4xbf16>
    %59 = vector.shape_cast %58 : vector<1x8x8x4xbf16> to vector<8x8x4xbf16>
    %60 = vector.shape_cast %59 : vector<8x8x4xbf16> to vector<64x4xbf16>
    %c6 = arith.constant 6 : index
    %c0_44 = arith.constant 0 : index
    %c0_45 = arith.constant 0 : index
    %61 = vector.load %arg3[%c6, %c0_44, %c0_45] : memref<9x4x128xbf16, #tpu.memory_space<vmem>>, vector<1x4x128xbf16>
    %62 = vector.shape_cast %61 : vector<1x4x128xbf16> to vector<4x128xbf16>
    %cst_46 = arith.constant dense<0.000000e+00> : vector<64x128xf32>
    %63 = tpu.matmul %60, %62, %cst_46 {dimension_numbers = #tpu.dot_dimension_numbers<[1], [0], [0], [1], [0, 0, 1, 1], [], []>} : vector<64x4xbf16>, vector<4x128xbf16>, vector<64x128xf32> -> vector<64x128xf32>
    %64 = arith.addf %55, %63 : vector<64x128xf32>
    %c1_i32_47 = arith.constant 1 : i32
    %65 = arith.addi %0, %c1_i32_47 : i32
    %c1_48 = arith.constant 1 : index
    %66 = arith.index_cast %65 : i32 to index
    %c0_49 = arith.constant 0 : index
    %c0_50 = arith.constant 0 : index
    %67 = vector.load %arg2[%c1_48, %66, %c0_49, %c0_50] : memref<4x9x9x4xbf16, #tpu.memory_space<vmem>>, vector<1x8x8x4xbf16>
    %68 = vector.shape_cast %67 : vector<1x8x8x4xbf16> to vector<8x8x4xbf16>
    %69 = vector.shape_cast %68 : vector<8x8x4xbf16> to vector<64x4xbf16>
    %c7 = arith.constant 7 : index
    %c0_51 = arith.constant 0 : index
    %c0_52 = arith.constant 0 : index
    %70 = vector.load %arg3[%c7, %c0_51, %c0_52] : memref<9x4x128xbf16, #tpu.memory_space<vmem>>, vector<1x4x128xbf16>
    %71 = vector.shape_cast %70 : vector<1x4x128xbf16> to vector<4x128xbf16>
    %cst_53 = arith.constant dense<0.000000e+00> : vector<64x128xf32>
    %72 = tpu.matmul %69, %71, %cst_53 {dimension_numbers = #tpu.dot_dimension_numbers<[1], [0], [0], [1], [0, 0, 1, 1], [], []>} : vector<64x4xbf16>, vector<4x128xbf16>, vector<64x128xf32> -> vector<64x128xf32>
    %73 = arith.addf %64, %72 : vector<64x128xf32>
    %c1_i32_54 = arith.constant 1 : i32
    %74 = arith.addi %0, %c1_i32_54 : i32
    %c0_55 = arith.constant 0 : index
    %75 = arith.index_cast %74 : i32 to index
    %c1_56 = arith.constant 1 : index
    %c0_57 = arith.constant 0 : index
    %76 = vector.load %arg2[%c0_55, %75, %c1_56, %c0_57] : memref<4x9x9x4xbf16, #tpu.memory_space<vmem>>, vector<1x8x8x4xbf16>
    %77 = vector.shape_cast %76 : vector<1x8x8x4xbf16> to vector<8x8x4xbf16>
    %78 = vector.shape_cast %77 : vector<8x8x4xbf16> to vector<64x4xbf16>
    %c8 = arith.constant 8 : index
    %c0_58 = arith.constant 0 : index
    %c0_59 = arith.constant 0 : index
    %79 = vector.load %arg3[%c8, %c0_58, %c0_59] : memref<9x4x128xbf16, #tpu.memory_space<vmem>>, vector<1x4x128xbf16>
    %80 = vector.shape_cast %79 : vector<1x4x128xbf16> to vector<4x128xbf16>
    %cst_60 = arith.constant dense<0.000000e+00> : vector<64x128xf32>
    %81 = tpu.matmul %78, %80, %cst_60 {dimension_numbers = #tpu.dot_dimension_numbers<[1], [0], [0], [1], [0, 0, 1, 1], [], []>} : vector<64x4xbf16>, vector<4x128xbf16>, vector<64x128xf32> -> vector<64x128xf32>
    %82 = arith.addf %73, %81 : vector<64x128xf32>
    %c0_61 = arith.constant 0 : index
    %c0_62 = arith.constant 0 : index
    %83 = vector.load %arg4[%c0_61, %c0_62] : memref<1x128xf32, #tpu.memory_space<vmem>>, vector<1x128xf32>
    %84 = vector.broadcast %83 : vector<1x128xf32> to vector<64x128xf32>
    %85 = arith.addf %82, %84 : vector<64x128xf32>
    %cst_63 = arith.constant dense<0.000000e+00> : vector<64xf32>
    %86 = vector.multi_reduction <add>, %85, %cst_63 [1] : vector<64x128xf32> to vector<64xf32>
    %87 = vector.shape_cast %86 : vector<64xf32> to vector<64x1xf32>
    %cst_64 = arith.constant 1.250000e-01 : f32
    %88 = vector.broadcast %cst_64 : f32 to vector<64x1xf32>
    %89 = arith.mulf %87, %88 : vector<64x1xf32>
    %90 = arith.mulf %85, %85 : vector<64x128xf32>
    %cst_65 = arith.constant dense<0.000000e+00> : vector<64xf32>
    %91 = vector.multi_reduction <add>, %90, %cst_65 [1] : vector<64x128xf32> to vector<64xf32>
    %92 = vector.shape_cast %91 : vector<64xf32> to vector<64x1xf32>
    %cst_66 = arith.constant 1.250000e-01 : f32
    %93 = vector.broadcast %cst_66 : f32 to vector<64x1xf32>
    %94 = arith.mulf %92, %93 : vector<64x1xf32>
    %95 = arith.mulf %89, %89 : vector<64x1xf32>
    %96 = arith.subf %94, %95 : vector<64x1xf32>
    %cst_67 = arith.constant 9.99999974E-6 : f32
    %97 = vector.broadcast %cst_67 : f32 to vector<64x1xf32>
    %98 = arith.addf %96, %97 : vector<64x1xf32>
    %99 = math.rsqrt %98 : vector<64x1xf32>
    %c0_68 = arith.constant 0 : index
    %c0_69 = arith.constant 0 : index
    %100 = vector.load %arg5[%c0_68, %c0_69] : memref<1x128xf32, #tpu.memory_space<vmem>>, vector<1x128xf32>
    %101 = vector.broadcast %99 : vector<64x1xf32> to vector<64x128xf32>
    %102 = vector.broadcast %100 : vector<1x128xf32> to vector<64x128xf32>
    %103 = arith.mulf %101, %102 : vector<64x128xf32>
    %104 = vector.broadcast %89 : vector<64x1xf32> to vector<64x128xf32>
    %105 = arith.subf %85, %104 : vector<64x128xf32>
    %106 = arith.mulf %105, %103 : vector<64x128xf32>
    %c0_70 = arith.constant 0 : index
    %c0_71 = arith.constant 0 : index
    %107 = vector.load %arg6[%c0_70, %c0_71] : memref<1x128xf32, #tpu.memory_space<vmem>>, vector<1x128xf32>
    %108 = vector.broadcast %107 : vector<1x128xf32> to vector<64x128xf32>
    %109 = arith.addf %106, %108 : vector<64x128xf32>
    %c0_72 = arith.constant 0 : index
    %c0_73 = arith.constant 0 : index
    %c0_74 = arith.constant 0 : index
    %110 = vector.load %arg7[%c0_72, %c0_73, %c0_74] : memref<1x64x128xf32, #tpu.memory_space<vmem>>, vector<1x64x128xf32>
    %111 = vector.shape_cast %110 : vector<1x64x128xf32> to vector<64x128xf32>
    %112 = vector.shape_cast %109 : vector<64x128xf32> to vector<1x64x128xf32>
    tpu.vector_store %arg7[%c0_72, %c0_73, %c0_74], %112 {strides = array<i32>} : memref<1x64x128xf32, #tpu.memory_space<vmem>>, vector<1x64x128xf32>,
    return
  }
  func.func @transform_0(%arg0: i32, %arg1: i32) -> (i32, i32, i32, i32) {
    %c0_i32 = arith.constant 0 : i32
    %c0_i32_0 = arith.constant 0 : i32
    %c0_i32_1 = arith.constant 0 : i32
    %c0_i32_2 = arith.constant 0 : i32
    return %arg0, %c0_i32, %c0_i32_0, %c0_i32_1 : i32, i32, i32, i32
  }
  func.func @transform_1(%arg0: i32, %arg1: i32) -> (i32, i32, i32) {
    %c0_i32 = arith.constant 0 : i32
    %c0_i32_0 = arith.constant 0 : i32
    %c0_i32_1 = arith.constant 0 : i32
    %c0_i32_2 = arith.constant 0 : i32
    return %c0_i32, %c0_i32_0, %c0_i32_1 : i32, i32, i32
  }
  func.func @transform_2(%arg0: i32, %arg1: i32) -> (i32, i32) {
    %c0_i32 = arith.constant 0 : i32
    %c0_i32_0 = arith.constant 0 : i32
    %c0_i32_1 = arith.constant 0 : i32
    return %c0_i32, %c0_i32_0 : i32, i32
  }
  func.func @transform_3(%arg0: i32, %arg1: i32) -> (i32, i32) {
    %c0_i32 = arith.constant 0 : i32
    %c0_i32_0 = arith.constant 0 : i32
    %c0_i32_1 = arith.constant 0 : i32
    return %c0_i32, %c0_i32_0 : i32, i32
  }
  func.func @transform_4(%arg0: i32, %arg1: i32) -> (i32, i32) {
    %c0_i32 = arith.constant 0 : i32
    %c0_i32_0 = arith.constant 0 : i32
    %c0_i32_1 = arith.constant 0 : i32
    return %c0_i32, %c0_i32_0 : i32, i32
  }
  func.func @transform_5(%arg0: i32, %arg1: i32) -> (i32, i32, i32) {
    %c0_i32 = arith.constant 0 : i32
    %c0_i32_0 = arith.constant 0 : i32
    return %arg0, %arg1, %c0_i32 : i32, i32, i32
  }
}

</mosaic_0001>

<llo_original>
// kernel: merge_block_forward.1
$region0: #{merge_block_forward.1}
  #allocation0 [shape = 'u32[]', space=smem, size = 0x4, offset = 0x4, fixed_abs, tag = 'smem constant byte address 0x4 - core index']
  #allocation1 [shape = 'u32[144,128]{1,0:T(1,128)}', space=vmem, size = 0x12000, scoped, tag = 'internal scratch']
  %s0 = inlined_call_operand.vmem [shape: bf16[8,9,9,4], index: 0, kind: input, shape index: {}]
  %s1 = inlined_call_operand.vmem [shape: bf16[9,4,128], index: 1, kind: input, shape index: {}]
  %s2 = inlined_call_operand.vmem [shape: f32[1,128], index: 2, kind: input, shape index: {}]
  %s3 = inlined_call_operand.vmem [shape: f32[1,128], index: 3, kind: input, shape index: {}]
  %s4 = inlined_call_operand.vmem [shape: f32[1,128], index: 4, kind: input, shape index: {}]
  %s5 = inlined_call_operand.vmem [shape: f32[2,64,128], index: 5, kind: output, shape index: {}]
  %s6 = sld [smem:[#allocation0]]
  $region53: #{merge_block_forward.1} parent=0
    _
  %s8 = ssub.s32 1, %s6
  %s9 = scalar_select 0, %s8, %s6
  loop: start=0, step=1, limit=4
  $region2: #{merge_block_forward.1} parent=0 // loop_pre_header
    _
  $region3: #{merge_block_forward.1} parent=0 // loop_header
    %s11 = sphi 0, %s15
    %p12 = scmp.ge.s32.totalorder %s11, 4
    %s18 = sphi 0, %s30
    %s19 = sphi 0, %s26
    %s20 = sphi 0, %s18
    %s21 = sphi 0, %s19
    %s22 = sphi 0, %s20
    %s23 = sphi 0, %s21
    %s33 = sphi 0, %s35
    %s36 = sphi 0, %s33
    %s37 = sphi 0, %s36
    %s53 = sphi 0, %s37
    %s57 = sphi 0, %s57
    %s59 = sphi 0, %s57
    %s60 = sphi 0, %s59
    %s74 = sphi 0, %s60
    %s78 = sphi 0, %s78
    %s80 = sphi 0, %s78
    %s81 = sphi 0, %s80
    %s95 = sphi 0, %s81
    %s99 = sphi 0, %s99
    %s101 = sphi 0, %s99
    %s102 = sphi 0, %s101
    %s116 = sphi 0, %s102
    %s120 = sphi 0, %s120
    %s122 = sphi 0, %s120
    %s123 = sphi 0, %s122
    %s137 = sphi 0, %s123
    %s145 = sphi 0, %s147
    %s148 = sphi 0, %s145
    %s149 = sphi 0, %s148
    %s165 = sphi 0, %s149
  $region4: #{merge_block_forward.1} parent=0 // loop_header_branch
    %14 = sbr.rel (%p12) target = $region8
  $region5: #{merge_block_forward.1} parent=0 // loop_body
    %s16 = ssub.s32 %s11, 1
    %s17 = ssub.s32 %s11, 2
    %s24 = sadd.s32 1, %s19
    %p25 = scmp.ge.s32.totalorder %s24, 1
    %s26 = scalar_select %p25, 0, %s24
    %s27 = sadd.s32 1, %s18
    %s28 = scalar_select %p25, %s27, %s18
    %p29 = scmp.ge.s32.totalorder %s28, 2
    %s30 = scalar_select %p29, 0, %s28
    %s31 = ssub.s32 %s18, %s30
    %p32 = scmp.eq.s32.totalorder %s31, 0
    %s34 = sadd.s32 %s33, 1
    %s35 = scalar_select %p32, %s33, %s34
    %p38 = pneg %p32
    %p39 = scmp.eq.s32.totalorder %s11, 1
    %p40 = por %p38, %p39
    %p41 = scmp.ne.s32.totalorder %s33, %s36
    %p42 = scmp.eq.s32.totalorder %s11, 0
    %p43 = por %p41, %p42
    %p44 = scmp.ne.s32.totalorder %s33, %s36
    %p45 = scmp.eq.s32.totalorder %s16, 1
    %p46 = por %p44, %p45
    %p47 = scmp.ne.s32.totalorder %s36, %s37
    %p48 = scmp.eq.s32.totalorder %s16, 0
    %p49 = por %p47, %p48
    %p50 = scmp.ne.s32.totalorder %s36, %s37
    %p51 = scmp.eq.s32.totalorder %s17, 1
    %p52 = por %p50, %p51
    %p54 = scmp.ne.s32.totalorder %s37, %s53
    %p55 = scmp.eq.s32.totalorder %s17, 0
    %p56 = por %p54, %p55
    %s58 = sadd.s32 %s57, 1
    %p61 = scmp.eq.s32.totalorder %s11, 1
    %p62 = scmp.ne.s32.totalorder %s57, %s59
    %p63 = scmp.eq.s32.totalorder %s11, 0
    %p64 = por %p62, %p63
    %p65 = scmp.ne.s32.totalorder %s57, %s59
    %p66 = scmp.eq.s32.totalorder %s16, 1
    %p67 = por %p65, %p66
    %p68 = scmp.ne.s32.totalorder %s59, %s60
    %p69 = scmp.eq.s32.totalorder %s16, 0
    %p70 = por %p68, %p69
    %p71 = scmp.ne.s32.totalorder %s59, %s60
    %p72 = scmp.eq.s32.totalorder %s17, 1
    %p73 = por %p71, %p72
    %p75 = scmp.ne.s32.totalorder %s60, %s74
    %p76 = scmp.eq.s32.totalorder %s17, 0
    %p77 = por %p75, %p76
    %s79 = sadd.s32 %s78, 1
    %p82 = scmp.eq.s32.totalorder %s11, 1
    %p83 = scmp.ne.s32.totalorder %s78, %s80
    %p84 = scmp.eq.s32.totalorder %s11, 0
    %p85 = por %p83, %p84
    %p86 = scmp.ne.s32.totalorder %s78, %s80
    %p87 = scmp.eq.s32.totalorder %s16, 1
    %p88 = por %p86, %p87
    %p89 = scmp.ne.s32.totalorder %s80, %s81
    %p90 = scmp.eq.s32.totalorder %s16, 0
    %p91 = por %p89, %p90
    %p92 = scmp.ne.s32.totalorder %s80, %s81
    %p93 = scmp.eq.s32.totalorder %s17, 1
    %p94 = por %p92, %p93
    %p96 = scmp.ne.s32.totalorder %s81, %s95
    %p97 = scmp.eq.s32.totalorder %s17, 0
    %p98 = por %p96, %p97
    %s100 = sadd.s32 %s99, 1
    %p103 = scmp.eq.s32.totalorder %s11, 1
    %p104 = scmp.ne.s32.totalorder %s99, %s101
    %p105 = scmp.eq.s32.totalorder %s11, 0
    %p106 = por %p104, %p105
    %p107 = scmp.ne.s32.totalorder %s99, %s101
    %p108 = scmp.eq.s32.totalorder %s16, 1
    %p109 = por %p107, %p108
    %p110 = scmp.ne.s32.totalorder %s101, %s102
    %p111 = scmp.eq.s32.totalorder %s16, 0
    %p112 = por %p110, %p111
    %p113 = scmp.ne.s32.totalorder %s101, %s102
    %p114 = scmp.eq.s32.totalorder %s17, 1
    %p115 = por %p113, %p114
    %p117 = scmp.ne.s32.totalorder %s102, %s116
    %p118 = scmp.eq.s32.totalorder %s17, 0
    %p119 = por %p117, %p118
    %s121 = sadd.s32 %s120, 1
    %p124 = scmp.eq.s32.totalorder %s11, 1
    %p125 = scmp.ne.s32.totalorder %s120, %s122
    %p126 = scmp.eq.s32.totalorder %s11, 0
    %p127 = por %p125, %p126
    %p128 = scmp.ne.s32.totalorder %s120, %s122
    %p129 = scmp.eq.s32.totalorder %s16, 1
    %p130 = por %p128, %p129
    %p131 = scmp.ne.s32.totalorder %s122, %s123
    %p132 = scmp.eq.s32.totalorder %s16, 0
    %p133 = por %p131, %p132
    %p134 = scmp.ne.s32.totalorder %s122, %s123
    %p135 = scmp.eq.s32.totalorder %s17, 1
    %p136 = por %p134, %p135
    %p138 = scmp.ne.s32.totalorder %s123, %s137
    %p139 = scmp.eq.s32.totalorder %s17, 0
    %p140 = por %p138, %p139
    %s141 = ssub.s32 %s18, %s30
    %s142 = ssub.s32 %s19, %s26
    %s143 = sor.u32 %s141, %s142
    %p144 = scmp.eq.s32.totalorder %s143, 0
    %s146 = sadd.s32 %s145, 1
    %s147 = scalar_select %p144, %s145, %s146
    %p150 = pneg %p144
    %p151 = scmp.eq.s32.totalorder %s11, 1
    %p152 = por %p150, %p151
    %p153 = scmp.ne.s32.totalorder %s145, %s148
    %p154 = scmp.eq.s32.totalorder %s11, 0
    %p155 = por %p153, %p154
    %p156 = scmp.ne.s32.totalorder %s145, %s148
    %p157 = scmp.eq.s32.totalorder %s16, 1
    %p158 = por %p156, %p157
    %p159 = scmp.ne.s32.totalorder %s148, %s149
    %p160 = scmp.eq.s32.totalorder %s16, 0
    %p161 = por %p159, %p160
    %p162 = scmp.ne.s32.totalorder %s148, %s149
    %p163 = scmp.eq.s32.totalorder %s17, 1
    %p164 = por %p162, %p163
    %p166 = scmp.ne.s32.totalorder %s149, %s165
    %p167 = scmp.eq.s32.totalorder %s17, 0
    %p168 = por %p166, %p167
    %p169 = scmp.le.s32.totalorder 1, %s11
    %p170 = scmp.lt.s32.totalorder %s11, 3
    %p171 = pnand %p169, %p170
    %p172 = pneg %p171
    // Predicated region
    $region9: #{merge_block_forward.1} parent=5 // pred_check
      _
    $region10: #{merge_block_forward.1} parent=5 // pred_check_branch
      %174 = sbr.rel (%p171) target = $region12
    $region11: #{merge_block_forward.1} parent=5 // pred_region
      %s175 = ssub.s32 %s11, 1
      // Predicated region
      $region13: #{merge_block_forward.1} parent=11 // pred_check
        %p176 = pneg %p70
      $region14: #{merge_block_forward.1} parent=11 // pred_check_branch
        %178 = sbr.rel (%p176) target = $region16
      $region15: #{merge_block_forward.1} parent=11 // pred_region
        _
      $region16: #{merge_block_forward.1} parent=11 // pred_fallthru
        _
      // Predicated region
      $region17: #{merge_block_forward.1} parent=11 // pred_check
        %p179 = pneg %p91
      $region18: #{merge_block_forward.1} parent=11 // pred_check_branch
        %181 = sbr.rel (%p179) target = $region20
      $region19: #{merge_block_forward.1} parent=11 // pred_region
        _
      $region20: #{merge_block_forward.1} parent=11 // pred_fallthru
        _
      // Predicated region
      $region21: #{merge_block_forward.1} parent=11 // pred_check
        %p182 = pneg %p112
      $region22: #{merge_block_forward.1} parent=11 // pred_check_branch
        %184 = sbr.rel (%p182) target = $region24
      $region23: #{merge_block_forward.1} parent=11 // pred_region
        _
      $region24: #{merge_block_forward.1} parent=11 // pred_fallthru
        _
      // Predicated region
      $region25: #{merge_block_forward.1} parent=11 // pred_check
        %p185 = pneg %p133
      $region26: #{merge_block_forward.1} parent=11 // pred_check_branch
        %187 = sbr.rel (%p185) target = $region28
      $region27: #{merge_block_forward.1} parent=11 // pred_region
        _
      $region28: #{merge_block_forward.1} parent=11 // pred_fallthru
        _
    $region12: #{merge_block_forward.1} parent=5 // pred_fallthru
      _
    %p188 = scmp.lt.s32.totalorder %s11, 2
    // Predicated region
    $region29: #{merge_block_forward.1} parent=5 // pred_check
      %p189 = pneg %p188
    $region30: #{merge_block_forward.1} parent=5 // pred_check_branch
      %191 = sbr.rel (%p189) target = $region32
    $region31: #{merge_block_forward.1} parent=5 // pred_region
      // Predicated region
      $region33: #{merge_block_forward.1} parent=31 // pred_check
        %p192 = pneg %p43
      $region34: #{merge_block_forward.1} parent=31 // pred_check_branch
        %194 = sbr.rel (%p192) target = $region36
      $region35: #{merge_block_forward.1} parent=31 // pred_region
        %s195 = smul.u32 4, %s18
        %p196 = scmp.lt.s32.totalorder %s195, 7
        %s197 = scalar_select %p196, %s195, 7
        %s198 = smul.addr %s197, 18
        %s199 = smul.addr %s198, 4
        %s200 = scalar_lea.vmem %s0, %s199
        %s201 = smul.u32 4, %s18
      $region36: #{merge_block_forward.1} parent=31 // pred_fallthru
        _
    $region32: #{merge_block_forward.1} parent=5 // pred_fallthru
      _
    %p202 = scmp.le.s32.totalorder 1, %s11
    %p203 = scmp.lt.s32.totalorder %s11, 3
    %p204 = pnand %p202, %p203
    %p205 = pneg %p204
    // Predicated region
    $region37: #{merge_block_forward.1} parent=5 // pred_check
      _
    $region38: #{merge_block_forward.1} parent=5 // pred_check_branch
      %207 = sbr.rel (%p204) target = $region40
    $region39: #{merge_block_forward.1} parent=5 // pred_region
      %s208 = ssub.s32 %s11, 1
      %s209 = smul.u32 4, %s20
      %p210 = scmp.lt.s32.totalorder %s209, 7
      %s211 = scalar_select %p210, %s209, 7
      %s212 = smul.addr %s211, 18
      %s213 = smul.addr %s212, 4
      %s214 = scalar_lea.vmem %s0, %s213
      %p215 = pneg %p49
      %p216 = pneg %p46
      %p217 = pneg %p70
      %p218 = pneg %p67
      %p219 = pneg %p91
      %p220 = pneg %p88
      %p221 = pneg %p112
      %p222 = pneg %p109
      %p223 = pneg %p133
      %p224 = pneg %p130
      %p225 = pneg %p161
      %p226 = pneg %p158
      %s227 = smul.u32 8, %s21
      %p228 = scmp.lt.s32.totalorder %s20, 1
      %s229 = scalar_select %p228, %s20, 1
      %p230 = scmp.lt.s32.totalorder %s227, 7
      %s231 = scalar_select %p230, %s227, 7
      %s232 = smul.addr %s229, 8
      %s233 = sadd.s32 %s231, %s232
      %s234 = smul.addr %s233, 8
      %s235 = scalar_lea.vmem %s5, %s234
      %s236 = smul.u32 4, %s20
      %p237 = scmp.lt.s32.totalorder %s236, 7
      %s238 = scalar_select %p237, %s236, 7
      %s239 = smul.addr %s238, 18
      %s240 = smul.addr %s239, 4
      %s241 = scalar_lea.vmem %s0, %s240
      %s242 = smul.u32 4, %s20
      %s243 = smul.u32 8, %s21
      %p244 = scmp.lt.s32.totalorder %s20, 1
      %s245 = scalar_select %p244, %s20, 1
      %p246 = scmp.lt.s32.totalorder %s243, 7
      %s247 = scalar_select %p246, %s243, 7
      %s248 = smul.addr %s245, 8
      %s249 = sadd.s32 %s247, %s248
      %s250 = smul.addr %s249, 8
      %s251 = scalar_lea.vmem %s5, %s250
      %s252 = smul.u32 8, %s21
      %s254 = smul.u32 %s21, 8
      %s255 = smul.u32 %s254, 2
      %s256 = smul.addr %s255, 4
      %s257 = scalar_lea.vmem %s241, %s256
      %v258 = vld [vmem:[%s257] sm:$0xf]
      %v259 = vld [vmem:[%s257 + $0x8] sm:$0xf]
      %v260 = vld [vmem:[%s257 + $0x10] sm:$0xf]
      %v261 = vld [vmem:[%s257 + $0x18] sm:$0xf]
      %v262 = vld [vmem:[%s257 + $0x20] sm:$0xf]
      %v263 = vld [vmem:[%s257 + $0x28] sm:$0xf]
      %v264 = vld [vmem:[%s257 + $0x30] sm:$0xf]
      %v265 = vld [vmem:[%s257 + $0x38] sm:$0xf]
      %v266 = vld [vmem:[%s1] sm:$0x3]
      %s267 = sadd.s32 %s255, 18
      %s268 = smul.addr %s267, 4
      %s269 = scalar_lea.vmem %s241, %s268
      %v270 = vld [vmem:[%s269] sm:$0xf]
      %v271 = vld [vmem:[%s269 + $0x8] sm:$0xf]
      %v272 = vld [vmem:[%s269 + $0x10] sm:$0xf]
      %v273 = vld [vmem:[%s269 + $0x18] sm:$0xf]
      %v274 = vld [vmem:[%s269 + $0x20] sm:$0xf]
      %v275 = vld [vmem:[%s269 + $0x28] sm:$0xf]
      %v276 = vld [vmem:[%s269 + $0x30] sm:$0xf]
      %v277 = vld [vmem:[%s269 + $0x38] sm:$0xf]
      %s278 = scalar_lea.vmem %s1, 2
      %v279 = vld [vmem:[%s278] sm:$0x3]
      %v288 = vunpack.c.l.b16 %v270
      %v289 = vunpack.c.l.b16 %v271
      %v290 = vunpack.c.l.b16 %v272
      %v291 = vunpack.c.l.b16 %v273
      %v292 = vunpack.c.l.b16 %v274
      %v293 = vunpack.c.l.b16 %v275
      %v294 = vunpack.c.l.b16 %v276
      %v295 = vunpack.c.l.b16 %v277
      %v296 = vpack.c.b16 %v289, %v288
      %v297 = vpack.c.b16 %v291, %v290
      %v298 = vpack.c.b16 %v293, %v292
      %v299 = vpack.c.b16 %v295, %v294
      %vm300 = vcmask 31744
      %v302 = vsel %vm300, %v296, 0
      %v305 = vsel %vm300, %v297, 0
      %v308 = vsel %vm300, %v298, 0
      %v311 = vsel %vm300, %v299, 0
      %vm313 = vcmask 1041408
      %v315 = vsel %vm313, %v279, 0
      %317 = vmatprep.subr.bf16.mxu0 0
      %318 = vmatpush1.bf16.msra.mxu0 0
      %319 = vmatprep.subr.bf16.mxu0 0
      %320 = vmatpush1.bf16.msra.mxu0 0
      %321 = vmatprep.subr.bf16.mxu0 0
      %322 = vmatpush1.bf16.msra.mxu0 0
      %323 = vmatprep.subr.bf16.mxu0 0
      %324 = vmatpush1.bf16.msra.mxu0 0
      %325 = vmatprep.subr.bf16.mxu0 0
      %326 = vmatpush1.bf16.msra.mxu0 0
      %327 = vmatprep.subr.bf16.mxu0 0
      %328 = vmatpush1.bf16.msra.mxu0 0
      %329 = vmatprep.subr.bf16.mxu0 0
      %330 = vmatpush1.bf16.msra.mxu0 0
      %331 = vmatprep.subr.bf16.mxu0 0
      %332 = vmatpush1.bf16.msra.mxu0 %v315
      %333 = vmatprep.subr.bf16.mxu0 0
      %334 = vmatpush2.bf16.msra.mxu0 0
      %335 = vmatprep.subr.bf16.mxu0 0
      %336 = vmatpush2.bf16.msra.mxu0 0
      %337 = vmatprep.subr.bf16.mxu0 0
      %338 = vmatpush2.bf16.msra.mxu0 0
      %339 = vmatprep.subr.bf16.mxu0 0
      %340 = vmatpush2.bf16.msra.mxu0 0
      %341 = vmatprep.subr.bf16.mxu0 0
      %342 = vmatpush2.bf16.msra.mxu0 0
      %343 = vmatprep.subr.bf16.mxu0 0
      %344 = vmatpush2.bf16.msra.mxu0 0
      %345 = vmatprep.subr.bf16.mxu0 0
      %346 = vmatpush2.bf16.msra.mxu0 0
      %347 = vmatprep.subr.bf16.mxu0 0
      %348 = vmatpush2.bf16.msra.mxu0 0
      %349 = vmatprep.mubr.bf16.mxu0 0
      %350 = vmatmul.mubr.bf16.gmra.mxu0 %v302
      %v351 = vpop.f32.mrf.mxu0
      %v352 = vadd.f32 0.0, %v351
      %v353 = vpop.f32.mrf.mxu0
      %v354 = vpop.f32.mrf.mxu0
      %v355 = vadd.f32 0.0, %v354
      %v356 = vpop.f32.mrf.mxu0
      %357 = vmatprep.mubr.bf16.mxu0 0
      %358 = vmatmul.mubr.bf16.gmra.mxu0 %v305
      %v359 = vpop.f32.mrf.mxu0
      %v360 = vadd.f32 0.0, %v359
      %v361 = vpop.f32.mrf.mxu0
      %v362 = vpop.f32.mrf.mxu0
      %v363 = vadd.f32 0.0, %v362
      %v364 = vpop.f32.mrf.mxu0
      %365 = vmatprep.mubr.bf16.mxu0 0
      %366 = vmatmul.mubr.bf16.gmra.mxu0 %v308
      %v367 = vpop.f32.mrf.mxu0
      %v368 = vadd.f32 0.0, %v367
      %v369 = vpop.f32.mrf.mxu0
      %v370 = vpop.f32.mrf.mxu0
      %v371 = vadd.f32 0.0, %v370
      %v372 = vpop.f32.mrf.mxu0
      %373 = vmatprep.mubr.bf16.mxu0 0
      %374 = vmatmul.mubr.bf16.gmra.mxu0 %v311
      %v375 = vpop.f32.mrf.mxu0
      %v376 = vadd.f32 0.0, %v375
      %v377 = vpop.f32.mrf.mxu0
      %v378 = vpop.f32.mrf.mxu0
      %v379 = vadd.f32 0.0, %v378
      %v380 = vpop.f32.mrf.mxu0
      %381 = vdwg.mxu0
      %v390 = vunpack.c.l.b16 %v258
      %v391 = vunpack.c.l.b16 %v259
      %v392 = vunpack.c.l.b16 %v260
      %v393 = vunpack.c.l.b16 %v261
      %v394 = vunpack.c.l.b16 %v262
      %v395 = vunpack.c.l.b16 %v263
      %v396 = vunpack.c.l.b16 %v264
      %v397 = vunpack.c.l.b16 %v265
      %v398 = vpack.c.b16 %v391, %v390
      %v399 = vpack.c.b16 %v393, %v392
      %v400 = vpack.c.b16 %v395, %v394
      %v401 = vpack.c.b16 %v397, %v396
      %v403 = vsel %vm300, %v398, 0
      %v406 = vsel %vm300, %v399, 0
      %v409 = vsel %vm300, %v400, 0
      %v412 = vsel %vm300, %v401, 0
      %v415 = vsel %vm313, %v266, 0
      %417 = vmatprep.subr.bf16.mxu0 0
      %418 = vmatpush1.bf16.msra.mxu0 0
      %419 = vmatprep.subr.bf16.mxu0 0
      %420 = vmatpush1.bf16.msra.mxu0 0
      %421 = vmatprep.subr.bf16.mxu0 0
      %422 = vmatpush1.bf16.msra.mxu0 0
      %423 = vmatprep.subr.bf16.mxu0 0
      %424 = vmatpush1.bf16.msra.mxu0 0
      %425 = vmatprep.subr.bf16.mxu0 0
      %426 = vmatpush1.bf16.msra.mxu0 0
      %427 = vmatprep.subr.bf16.mxu0 0
      %428 = vmatpush1.bf16.msra.mxu0 0
      %429 = vmatprep.subr.bf16.mxu0 0
      %430 = vmatpush1.bf16.msra.mxu0 0
      %431 = vmatprep.subr.bf16.mxu0 0
      %432 = vmatpush1.bf16.msra.mxu0 %v415
      %433 = vmatprep.subr.bf16.mxu0 0
      %434 = vmatpush2.bf16.msra.mxu0 0
      %435 = vmatprep.subr.bf16.mxu0 0
      %436 = vmatpush2.bf16.msra.mxu0 0
      %437 = vmatprep.subr.bf16.mxu0 0
      %438 = vmatpush2.bf16.msra.mxu0 0
      %439 = vmatprep.subr.bf16.mxu0 0
      %440 = vmatpush2.bf16.msra.mxu0 0
      %441 = vmatprep.subr.bf16.mxu0 0
      %442 = vmatpush2.bf16.msra.mxu0 0
      %443 = vmatprep.subr.bf16.mxu0 0
      %444 = vmatpush2.bf16.msra.mxu0 0
      %445 = vmatprep.subr.bf16.mxu0 0
      %446 = vmatpush2.bf16.msra.mxu0 0
      %447 = vmatprep.subr.bf16.mxu0 0
      %448 = vmatpush2.bf16.msra.mxu0 0
      %449 = vmatprep.mubr.bf16.mxu0 0
      %450 = vmatmul.mubr.bf16.gmra.mxu0 %v403
      %v451 = vpop.f32.mrf.mxu0
      %v452 = vadd.f32 %v352, %v451
      %v453 = vpop.f32.mrf.mxu0
      %v454 = vpop.f32.mrf.mxu0
      %v455 = vadd.f32 %v355, %v454
      %v456 = vpop.f32.mrf.mxu0
      %457 = vmatprep.mubr.bf16.mxu0 0
      %458 = vmatmul.mubr.bf16.gmra.mxu0 %v406
      %v459 = vpop.f32.mrf.mxu0
      %v460 = vadd.f32 %v360, %v459
      %v461 = vpop.f32.mrf.mxu0
      %v462 = vpop.f32.mrf.mxu0
      %v463 = vadd.f32 %v363, %v462
      %v464 = vpop.f32.mrf.mxu0
      %465 = vmatprep.mubr.bf16.mxu0 0
      %466 = vmatmul.mubr.bf16.gmra.mxu0 %v409
      %v467 = vpop.f32.mrf.mxu0
      %v468 = vadd.f32 %v368, %v467
      %v469 = vpop.f32.mrf.mxu0
      %v470 = vpop.f32.mrf.mxu0
      %v471 = vadd.f32 %v371, %v470
      %v472 = vpop.f32.mrf.mxu0
      %473 = vmatprep.mubr.bf16.mxu0 0
      %474 = vmatmul.mubr.bf16.gmra.mxu0 %v412
      %v475 = vpop.f32.mrf.mxu0
      %v476 = vadd.f32 %v376, %v475
      %v477 = vpop.f32.mrf.mxu0
      %v478 = vpop.f32.mrf.mxu0
      %v479 = vadd.f32 %v379, %v478
      %v480 = vpop.f32.mrf.mxu0
      %481 = vdwg.mxu0
      %v482 = vld [vmem:[%s257] sm:$0xf]
      %v483 = vld [vmem:[%s257 + $0x4] sm:$0x1]
      %v484 = vld [vmem:[%s257 + $0x8] sm:$0xf]
      %v485 = vld [vmem:[%s257 + $0xc] sm:$0x1]
      %v486 = vld [vmem:[%s257 + $0x10] sm:$0xf]
      %v487 = vld [vmem:[%s257 + $0x14] sm:$0x1]
      %v488 = vld [vmem:[%s257 + $0x18] sm:$0xf]
      %v489 = vld [vmem:[%s257 + $0x1c] sm:$0x1]
      %v490 = vld [vmem:[%s257 + $0x20] sm:$0xf]
      %v491 = vld [vmem:[%s257 + $0x24] sm:$0x1]
      %v492 = vld [vmem:[%s257 + $0x28] sm:$0xf]
      %v493 = vld [vmem:[%s257 + $0x2c] sm:$0x1]
      %v494 = vld [vmem:[%s257 + $0x30] sm:$0xf]
      %v495 = vld [vmem:[%s257 + $0x34] sm:$0x1]
      %v496 = vld [vmem:[%s257 + $0x38] sm:$0xf]
      %v497 = vld [vmem:[%s257 + $0x3c] sm:$0x1]
      %vm498 = vsmask.f32 3328
      %vm499 = vsmask.f32 7440
      %vm500 = vmor %vm498, %vm499
      %v502 = vshrl.u32 %v482, 16
      %v504 = vrot.slane %v502, 4
      %v505 = vshll.u32 %v482, 16
      %v507 = vrot.slane %v505, 5
      %v508 = vor.u32 %v504, %v507
      %v509 = vrot.slane %v508, 4
      %v511 = vshll.u32 %v483, 16
      %v513 = vrot.slane %v511, 5
      %v514 = vsel %vm500, %v509, %v513
      %v516 = vshrl.u32 %v484, 16
      %v518 = vrot.slane %v516, 4
      %v519 = vshll.u32 %v484, 16
      %v521 = vrot.slane %v519, 5
      %v522 = vor.u32 %v518, %v521
      %v523 = vrot.slane %v522, 4
      %v525 = vshll.u32 %v485, 16
      %v527 = vrot.slane %v525, 5
      %v528 = vsel %vm500, %v523, %v527
      %v530 = vshrl.u32 %v486, 16
      %v532 = vrot.slane %v530, 4
      %v533 = vshll.u32 %v486, 16
      %v535 = vrot.slane %v533, 5
      %v536 = vor.u32 %v532, %v535
      %v537 = vrot.slane %v536, 4
      %v539 = vshll.u32 %v487, 16
      %v541 = vrot.slane %v539, 5
      %v542 = vsel %vm500, %v537, %v541
      %v544 = vshrl.u32 %v488, 16
      %v546 = vrot.slane %v544, 4
      %v547 = vshll.u32 %v488, 16
      %v549 = vrot.slane %v547, 5
      %v550 = vor.u32 %v546, %v549
      %v551 = vrot.slane %v550, 4
      %v553 = vshll.u32 %v489, 16
      %v555 = vrot.slane %v553, 5
      %v556 = vsel %vm500, %v551, %v555
      %v558 = vshrl.u32 %v490, 16
      %v560 = vrot.slane %v558, 4
      %v561 = vshll.u32 %v490, 16
      %v563 = vrot.slane %v561, 5
      %v564 = vor.u32 %v560, %v563
      %v565 = vrot.slane %v564, 4
      %v567 = vshll.u32 %v491, 16
      %v569 = vrot.slane %v567, 5
      %v570 = vsel %vm500, %v565, %v569
      %v572 = vshrl.u32 %v492, 16
      %v574 = vrot.slane %v572, 4
      %v575 = vshll.u32 %v492, 16
      %v577 = vrot.slane %v575, 5
      %v578 = vor.u32 %v574, %v577
      %v579 = vrot.slane %v578, 4
      %v581 = vshll.u32 %v493, 16
      %v583 = vrot.slane %v581, 5
      %v584 = vsel %vm500, %v579, %v583
      %v586 = vshrl.u32 %v494, 16
      %v588 = vrot.slane %v586, 4
      %v589 = vshll.u32 %v494, 16
      %v591 = vrot.slane %v589, 5
      %v592 = vor.u32 %v588, %v591
      %v593 = vrot.slane %v592, 4
      %v595 = vshll.u32 %v495, 16
      %v597 = vrot.slane %v595, 5
      %v598 = vsel %vm500, %v593, %v597
      %v600 = vshrl.u32 %v496, 16
      %v602 = vrot.slane %v600, 4
      %v603 = vshll.u32 %v496, 16
      %v605 = vrot.slane %v603, 5
      %v606 = vor.u32 %v602, %v605
      %v607 = vrot.slane %v606, 4
      %v609 = vshll.u32 %v497, 16
      %v611 = vrot.slane %v609, 5
      %v612 = vsel %vm500, %v607, %v611
      %s613 = scalar_lea.vmem %s1, 4
      %v614 = vld [vmem:[%s613] sm:$0x3]
      %v615 = vunpack.c.l.b16 %v514
      %v616 = vunpack.c.l.b16 %v528
      %v617 = vunpack.c.l.b16 %v542
      %v618 = vunpack.c.l.b16 %v556
      %v619 = vunpack.c.l.b16 %v570
      %v620 = vunpack.c.l.b16 %v584
      %v621 = vunpack.c.l.b16 %v598
      %v622 = vunpack.c.l.b16 %v612
      %v623 = vpack.c.b16 %v616, %v615
      %v624 = vpack.c.b16 %v618, %v617
      %v625 = vpack.c.b16 %v620, %v619
      %v626 = vpack.c.b16 %v622, %v621
      %v628 = vsel %vm300, %v623, 0
      %v631 = vsel %vm300, %v624, 0
      %v634 = vsel %vm300, %v625, 0
      %v637 = vsel %vm300, %v626, 0
      %v640 = vsel %vm313, %v614, 0
      %642 = vmatprep.subr.bf16.mxu0 0
      %643 = vmatpush1.bf16.msra.mxu0 0
      %644 = vmatprep.subr.bf16.mxu0 0
      %645 = vmatpush1.bf16.msra.mxu0 0
      %646 = vmatprep.subr.bf16.mxu0 0
      %647 = vmatpush1.bf16.msra.mxu0 0
      %648 = vmatprep.subr.bf16.mxu0 0
      %649 = vmatpush1.bf16.msra.mxu0 0
      %650 = vmatprep.subr.bf16.mxu0 0
      %651 = vmatpush1.bf16.msra.mxu0 0
      %652 = vmatprep.subr.bf16.mxu0 0
      %653 = vmatpush1.bf16.msra.mxu0 0
      %654 = vmatprep.subr.bf16.mxu0 0
      %655 = vmatpush1.bf16.msra.mxu0 0
      %656 = vmatprep.subr.bf16.mxu0 0
      %657 = vmatpush1.bf16.msra.mxu0 %v640
      %658 = vmatprep.subr.bf16.mxu0 0
      %659 = vmatpush2.bf16.msra.mxu0 0
      %660 = vmatprep.subr.bf16.mxu0 0
      %661 = vmatpush2.bf16.msra.mxu0 0
      %662 = vmatprep.subr.bf16.mxu0 0
      %663 = vmatpush2.bf16.msra.mxu0 0
      %664 = vmatprep.subr.bf16.mxu0 0
      %665 = vmatpush2.bf16.msra.mxu0 0
      %666 = vmatprep.subr.bf16.mxu0 0
      %667 = vmatpush2.bf16.msra.mxu0 0
      %668 = vmatprep.subr.bf16.mxu0 0
      %669 = vmatpush2.bf16.msra.mxu0 0
      %670 = vmatprep.subr.bf16.mxu0 0
      %671 = vmatpush2.bf16.msra.mxu0 0
      %672 = vmatprep.subr.bf16.mxu0 0
      %673 = vmatpush2.bf16.msra.mxu0 0
      %674 = vmatprep.mubr.bf16.mxu0 0
      %675 = vmatmul.mubr.bf16.gmra.mxu0 %v628
      %v676 = vpop.f32.mrf.mxu0
      %v677 = vadd.f32 0.0, %v676
      %v678 = vpop.f32.mrf.mxu0
      %v679 = vpop.f32.mrf.mxu0
      %v680 = vadd.f32 0.0, %v679
      %v681 = vpop.f32.mrf.mxu0
      %682 = vmatprep.mubr.bf16.mxu0 0
      %683 = vmatmul.mubr.bf16.gmra.mxu0 %v631
      %v684 = vpop.f32.mrf.mxu0
      %v685 = vadd.f32 0.0, %v684
      %v686 = vpop.f32.mrf.mxu0
      %v687 = vpop.f32.mrf.mxu0
      %v688 = vadd.f32 0.0, %v687
      %v689 = vpop.f32.mrf.mxu0
      %690 = vmatprep.mubr.bf16.mxu0 0
      %691 = vmatmul.mubr.bf16.gmra.mxu0 %v634
      %v692 = vpop.f32.mrf.mxu0
      %v693 = vadd.f32 0.0, %v692
      %v694 = vpop.f32.mrf.mxu0
      %v695 = vpop.f32.mrf.mxu0
      %v696 = vadd.f32 0.0, %v695
      %v697 = vpop.f32.mrf.mxu0
      %698 = vmatprep.mubr.bf16.mxu0 0
      %699 = vmatmul.mubr.bf16.gmra.mxu0 %v637
      %v700 = vpop.f32.mrf.mxu0
      %v701 = vadd.f32 0.0, %v700
      %v702 = vpop.f32.mrf.mxu0
      %v703 = vpop.f32.mrf.mxu0
      %v704 = vadd.f32 0.0, %v703
      %v705 = vpop.f32.mrf.mxu0
      %706 = vdwg.mxu0
      %v707 = vadd.f32 %v452, %v677
      %v708 = vadd.f32 %v455, %v680
      %v709 = vadd.f32 %v460, %v685
      %v710 = vadd.f32 %v463, %v688
      %v711 = vadd.f32 %v468, %v693
      %v712 = vadd.f32 %v471, %v696
      %v713 = vadd.f32 %v476, %v701
      %v714 = vadd.f32 %v479, %v704
      %s715 = sadd.s32 %s255, 36
      %s716 = smul.addr %s715, 4
      %s717 = scalar_lea.vmem %s241, %s716
      %v718 = vld [vmem:[%s717] sm:$0xf]
      %v719 = vld [vmem:[%s717 + $0x8] sm:$0xf]
      %v720 = vld [vmem:[%s717 + $0x10] sm:$0xf]
      %v721 = vld [vmem:[%s717 + $0x18] sm:$0xf]
      %v722 = vld [vmem:[%s717 + $0x20] sm:$0xf]
      %v723 = vld [vmem:[%s717 + $0x28] sm:$0xf]
      %v724 = vld [vmem:[%s717 + $0x30] sm:$0xf]
      %v725 = vld [vmem:[%s717 + $0x38] sm:$0xf]
      %s726 = scalar_lea.vmem %s1, 6
      %v727 = vld [vmem:[%s726] sm:$0x3]
      %v736 = vunpack.c.l.b16 %v718
      %v737 = vunpack.c.l.b16 %v719
      %v738 = vunpack.c.l.b16 %v720
      %v739 = vunpack.c.l.b16 %v721
      %v740 = vunpack.c.l.b16 %v722
      %v741 = vunpack.c.l.b16 %v723
      %v742 = vunpack.c.l.b16 %v724
      %v743 = vunpack.c.l.b16 %v725
      %v744 = vpack.c.b16 %v737, %v736
      %v745 = vpack.c.b16 %v739, %v738
      %v746 = vpack.c.b16 %v741, %v740
      %v747 = vpack.c.b16 %v743, %v742
      %v749 = vsel %vm300, %v744, 0
      %v752 = vsel %vm300, %v745, 0
      %v755 = vsel %vm300, %v746, 0
      %v758 = vsel %vm300, %v747, 0
      %v761 = vsel %vm313, %v727, 0
      %763 = vmatprep.subr.bf16.mxu0 0
      %764 = vmatpush1.bf16.msra.mxu0 0
      %765 = vmatprep.subr.bf16.mxu0 0
      %766 = vmatpush1.bf16.msra.mxu0 0
      %767 = vmatprep.subr.bf16.mxu0 0
      %768 = vmatpush1.bf16.msra.mxu0 0
      %769 = vmatprep.subr.bf16.mxu0 0
      %770 = vmatpush1.bf16.msra.mxu0 0
      %771 = vmatprep.subr.bf16.mxu0 0
      %772 = vmatpush1.bf16.msra.mxu0 0
      %773 = vmatprep.subr.bf16.mxu0 0
      %774 = vmatpush1.bf16.msra.mxu0 0
      %775 = vmatprep.subr.bf16.mxu0 0
      %776 = vmatpush1.bf16.msra.mxu0 0
      %777 = vmatprep.subr.bf16.mxu0 0
      %778 = vmatpush1.bf16.msra.mxu0 %v761
      %779 = vmatprep.subr.bf16.mxu0 0
      %780 = vmatpush2.bf16.msra.mxu0 0
      %781 = vmatprep.subr.bf16.mxu0 0
      %782 = vmatpush2.bf16.msra.mxu0 0
      %783 = vmatprep.subr.bf16.mxu0 0
      %784 = vmatpush2.bf16.msra.mxu0 0
      %785 = vmatprep.subr.bf16.mxu0 0
      %786 = vmatpush2.bf16.msra.mxu0 0
      %787 = vmatprep.subr.bf16.mxu0 0
      %788 = vmatpush2.bf16.msra.mxu0 0
      %789 = vmatprep.subr.bf16.mxu0 0
      %790 = vmatpush2.bf16.msra.mxu0 0
      %791 = vmatprep.subr.bf16.mxu0 0
      %792 = vmatpush2.bf16.msra.mxu0 0
      %793 = vmatprep.subr.bf16.mxu0 0
      %794 = vmatpush2.bf16.msra.mxu0 0
      %795 = vmatprep.mubr.bf16.mxu0 0
      %796 = vmatmul.mubr.bf16.gmra.mxu0 %v749
      %v797 = vpop.f32.mrf.mxu0
      %v798 = vadd.f32 0.0, %v797
      %v799 = vpop.f32.mrf.mxu0
      %v800 = vpop.f32.mrf.mxu0
      %v801 = vadd.f32 0.0, %v800
      %v802 = vpop.f32.mrf.mxu0
      %803 = vmatprep.mubr.bf16.mxu0 0
      %804 = vmatmul.mubr.bf16.gmra.mxu0 %v752
      %v805 = vpop.f32.mrf.mxu0
      %v806 = vadd.f32 0.0, %v805
      %v807 = vpop.f32.mrf.mxu0
      %v808 = vpop.f32.mrf.mxu0
      %v809 = vadd.f32 0.0, %v808
      %v810 = vpop.f32.mrf.mxu0
      %811 = vmatprep.mubr.bf16.mxu0 0
      %812 = vmatmul.mubr.bf16.gmra.mxu0 %v755
      %v813 = vpop.f32.mrf.mxu0
      %v814 = vadd.f32 0.0, %v813
      %v815 = vpop.f32.mrf.mxu0
      %v816 = vpop.f32.mrf.mxu0
      %v817 = vadd.f32 0.0, %v816
      %v818 = vpop.f32.mrf.mxu0
      %819 = vmatprep.mubr.bf16.mxu0 0
      %820 = vmatmul.mubr.bf16.gmra.mxu0 %v758
      %v821 = vpop.f32.mrf.mxu0
      %v822 = vadd.f32 0.0, %v821
      %v823 = vpop.f32.mrf.mxu0
      %v824 = vpop.f32.mrf.mxu0
      %v825 = vadd.f32 0.0, %v824
      %v826 = vpop.f32.mrf.mxu0
      %827 = vdwg.mxu0
      %v828 = vadd.f32 %v707, %v798
      %v829 = vadd.f32 %v708, %v801
      %v830 = vadd.f32 %v709, %v806
      %v831 = vadd.f32 %v710, %v809
      %v832 = vadd.f32 %v711, %v814
      %v833 = vadd.f32 %v712, %v817
      %v834 = vadd.f32 %v713, %v822
      %v835 = vadd.f32 %v714, %v825
      %s836 = sadd.s32 %s255, 54
      %s837 = smul.addr %s836, 4
      %s838 = scalar_lea.vmem %s241, %s837
      %v839 = vld [vmem:[%s838] sm:$0xf]
      %v840 = vld [vmem:[%s838 + $0x8] sm:$0xf]
      %v841 = vld [vmem:[%s838 + $0x10] sm:$0xf]
      %v842 = vld [vmem:[%s838 + $0x18] sm:$0xf]
      %v843 = vld [vmem:[%s838 + $0x20] sm:$0xf]
      %v844 = vld [vmem:[%s838 + $0x28] sm:$0xf]
      %v845 = vld [vmem:[%s838 + $0x30] sm:$0xf]
      %v846 = vld [vmem:[%s838 + $0x38] sm:$0xf]
      %s847 = scalar_lea.vmem %s1, 8
      %v848 = vld [vmem:[%s847] sm:$0x3]
      %v857 = vunpack.c.l.b16 %v839
      %v858 = vunpack.c.l.b16 %v840
      %v859 = vunpack.c.l.b16 %v841
      %v860 = vunpack.c.l.b16 %v842
      %v861 = vunpack.c.l.b16 %v843
      %v862 = vunpack.c.l.b16 %v844
      %v863 = vunpack.c.l.b16 %v845
      %v864 = vunpack.c.l.b16 %v846
      %v865 = vpack.c.b16 %v858, %v857
      %v866 = vpack.c.b16 %v860, %v859
      %v867 = vpack.c.b16 %v862, %v861
      %v868 = vpack.c.b16 %v864, %v863
      %v870 = vsel %vm300, %v865, 0
      %v873 = vsel %vm300, %v866, 0
      %v876 = vsel %vm300, %v867, 0
      %v879 = vsel %vm300, %v868, 0
      %v882 = vsel %vm313, %v848, 0
      %884 = vmatprep.subr.bf16.mxu0 0
      %885 = vmatpush1.bf16.msra.mxu0 0
      %886 = vmatprep.subr.bf16.mxu0 0
      %887 = vmatpush1.bf16.msra.mxu0 0
      %888 = vmatprep.subr.bf16.mxu0 0
      %889 = vmatpush1.bf16.msra.mxu0 0
      %890 = vmatprep.subr.bf16.mxu0 0
      %891 = vmatpush1.bf16.msra.mxu0 0
      %892 = vmatprep.subr.bf16.mxu0 0
      %893 = vmatpush1.bf16.msra.mxu0 0
      %894 = vmatprep.subr.bf16.mxu0 0
      %895 = vmatpush1.bf16.msra.mxu0 0
      %896 = vmatprep.subr.bf16.mxu0 0
      %897 = vmatpush1.bf16.msra.mxu0 0
      %898 = vmatprep.subr.bf16.mxu0 0
      %899 = vmatpush1.bf16.msra.mxu0 %v882
      %900 = vmatprep.subr.bf16.mxu0 0
      %901 = vmatpush2.bf16.msra.mxu0 0
      %902 = vmatprep.subr.bf16.mxu0 0
      %903 = vmatpush2.bf16.msra.mxu0 0
      %904 = vmatprep.subr.bf16.mxu0 0
      %905 = vmatpush2.bf16.msra.mxu0 0
      %906 = vmatprep.subr.bf16.mxu0 0
      %907 = vmatpush2.bf16.msra.mxu0 0
      %908 = vmatprep.subr.bf16.mxu0 0
      %909 = vmatpush2.bf16.msra.mxu0 0
      %910 = vmatprep.subr.bf16.mxu0 0
      %911 = vmatpush2.bf16.msra.mxu0 0
      %912 = vmatprep.subr.bf16.mxu0 0
      %913 = vmatpush2.bf16.msra.mxu0 0
      %914 = vmatprep.subr.bf16.mxu0 0
      %915 = vmatpush2.bf16.msra.mxu0 0
      %916 = vmatprep.mubr.bf16.mxu0 0
      %917 = vmatmul.mubr.bf16.gmra.mxu0 %v870
      %v918 = vpop.f32.mrf.mxu0
      %v919 = vadd.f32 0.0, %v918
      %v920 = vpop.f32.mrf.mxu0
      %v921 = vpop.f32.mrf.mxu0
      %v922 = vadd.f32 0.0, %v921
      %v923 = vpop.f32.mrf.mxu0
      %924 = vmatprep.mubr.bf16.mxu0 0
      %925 = vmatmul.mubr.bf16.gmra.mxu0 %v873
      %v926 = vpop.f32.mrf.mxu0
      %v927 = vadd.f32 0.0, %v926
      %v928 = vpop.f32.mrf.mxu0
      %v929 = vpop.f32.mrf.mxu0
      %v930 = vadd.f32 0.0, %v929
      %v931 = vpop.f32.mrf.mxu0
      %932 = vmatprep.mubr.bf16.mxu0 0
      %933 = vmatmul.mubr.bf16.gmra.mxu0 %v876
      %v934 = vpop.f32.mrf.mxu0
      %v935 = vadd.f32 0.0, %v934
      %v936 = vpop.f32.mrf.mxu0
      %v937 = vpop.f32.mrf.mxu0
      %v938 = vadd.f32 0.0, %v937
      %v939 = vpop.f32.mrf.mxu0
      %940 = vmatprep.mubr.bf16.mxu0 0
      %941 = vmatmul.mubr.bf16.gmra.mxu0 %v879
      %v942 = vpop.f32.mrf.mxu0
      %v943 = vadd.f32 0.0, %v942
      %v944 = vpop.f32.mrf.mxu0
      %v945 = vpop.f32.mrf.mxu0
      %v946 = vadd.f32 0.0, %v945
      %v947 = vpop.f32.mrf.mxu0
      %948 = vdwg.mxu0
      %v949 = vadd.f32 %v828, %v919
      %v950 = vadd.f32 %v829, %v922
      %v951 = vadd.f32 %v830, %v927
      %v952 = vadd.f32 %v831, %v930
      %v953 = vadd.f32 %v832, %v935
      %v954 = vadd.f32 %v833, %v938
      %v955 = vadd.f32 %v834, %v943
      %v956 = vadd.f32 %v835, %v946
      %v957 = vld [vmem:[%s717] sm:$0xf]
      %v958 = vld [vmem:[%s717 + $0x4] sm:$0x1]
      %v959 = vld [vmem:[%s717 + $0x8] sm:$0xf]
      %v960 = vld [vmem:[%s717 + $0xc] sm:$0x1]
      %v961 = vld [vmem:[%s717 + $0x10] sm:$0xf]
      %v962 = vld [vmem:[%s717 + $0x14] sm:$0x1]
      %v963 = vld [vmem:[%s717 + $0x18] sm:$0xf]
      %v964 = vld [vmem:[%s717 + $0x1c] sm:$0x1]
      %v965 = vld [vmem:[%s717 + $0x20] sm:$0xf]
      %v966 = vld [vmem:[%s717 + $0x24] sm:$0x1]
      %v967 = vld [vmem:[%s717 + $0x28] sm:$0xf]
      %v968 = vld [vmem:[%s717 + $0x2c] sm:$0x1]
      %v969 = vld [vmem:[%s717 + $0x30] sm:$0xf]
      %v970 = vld [vmem:[%s717 + $0x34] sm:$0x1]
      %v971 = vld [vmem:[%s717 + $0x38] sm:$0xf]
      %v972 = vld [vmem:[%s717 + $0x3c] sm:$0x1]
      %v974 = vshrl.u32 %v957, 16
      %v976 = vrot.slane %v974, 4
      %v977 = vshll.u32 %v957, 16
      %v979 = vrot.slane %v977, 5
      %v980 = vor.u32 %v976, %v979
      %v981 = vrot.slane %v980, 4
      %v983 = vshll.u32 %v958, 16
      %v985 = vrot.slane %v983, 5
      %v986 = vsel %vm500, %v981, %v985
      %v988 = vshrl.u32 %v959, 16
      %v990 = vrot.slane %v988, 4
      %v991 = vshll.u32 %v959, 16
      %v993 = vrot.slane %v991, 5
      %v994 = vor.u32 %v990, %v993
      %v995 = vrot.slane %v994, 4
      %v997 = vshll.u32 %v960, 16
      %v999 = vrot.slane %v997, 5
      %v1000 = vsel %vm500, %v995, %v999
      %v1002 = vshrl.u32 %v961, 16
      %v1004 = vrot.slane %v1002, 4
      %v1005 = vshll.u32 %v961, 16
      %v1007 = vrot.slane %v1005, 5
      %v1008 = vor.u32 %v1004, %v1007
      %v1009 = vrot.slane %v1008, 4
      %v1011 = vshll.u32 %v962, 16
      %v1013 = vrot.slane %v1011, 5
      %v1014 = vsel %vm500, %v1009, %v1013
      %v1016 = vshrl.u32 %v963, 16
      %v1018 = vrot.slane %v1016, 4
      %v1019 = vshll.u32 %v963, 16
      %v1021 = vrot.slane %v1019, 5
      %v1022 = vor.u32 %v1018, %v1021
      %v1023 = vrot.slane %v1022, 4
      %v1025 = vshll.u32 %v964, 16
      %v1027 = vrot.slane %v1025, 5
      %v1028 = vsel %vm500, %v1023, %v1027
      %v1030 = vshrl.u32 %v965, 16
      %v1032 = vrot.slane %v1030, 4
      %v1033 = vshll.u32 %v965, 16
      %v1035 = vrot.slane %v1033, 5
      %v1036 = vor.u32 %v1032, %v1035
      %v1037 = vrot.slane %v1036, 4
      %v1039 = vshll.u32 %v966, 16
      %v1041 = vrot.slane %v1039, 5
      %v1042 = vsel %vm500, %v1037, %v1041
      %v1044 = vshrl.u32 %v967, 16
      %v1046 = vrot.slane %v1044, 4
      %v1047 = vshll.u32 %v967, 16
      %v1049 = vrot.slane %v1047, 5
      %v1050 = vor.u32 %v1046, %v1049
      %v1051 = vrot.slane %v1050, 4
      %v1053 = vshll.u32 %v968, 16
      %v1055 = vrot.slane %v1053, 5
      %v1056 = vsel %vm500, %v1051, %v1055
      %v1058 = vshrl.u32 %v969, 16
      %v1060 = vrot.slane %v1058, 4
      %v1061 = vshll.u32 %v969, 16
      %v1063 = vrot.slane %v1061, 5
      %v1064 = vor.u32 %v1060, %v1063
      %v1065 = vrot.slane %v1064, 4
      %v1067 = vshll.u32 %v970, 16
      %v1069 = vrot.slane %v1067, 5
      %v1070 = vsel %vm500, %v1065, %v1069
      %v1072 = vshrl.u32 %v971, 16
      %v1074 = vrot.slane %v1072, 4
      %v1075 = vshll.u32 %v971, 16
      %v1077 = vrot.slane %v1075, 5
      %v1078 = vor.u32 %v1074, %v1077
      %v1079 = vrot.slane %v1078, 4
      %v1081 = vshll.u32 %v972, 16
      %v1083 = vrot.slane %v1081, 5
      %v1084 = vsel %vm500, %v1079, %v1083
      %s1085 = scalar_lea.vmem %s1, 10
      %v1086 = vld [vmem:[%s1085] sm:$0x3]
      %v1087 = vunpack.c.l.b16 %v986
      %v1088 = vunpack.c.l.b16 %v1000
      %v1089 = vunpack.c.l.b16 %v1014
      %v1090 = vunpack.c.l.b16 %v1028
      %v1091 = vunpack.c.l.b16 %v1042
      %v1092 = vunpack.c.l.b16 %v1056
      %v1093 = vunpack.c.l.b16 %v1070
      %v1094 = vunpack.c.l.b16 %v1084
      %v1095 = vpack.c.b16 %v1088, %v1087
      %v1096 = vpack.c.b16 %v1090, %v1089
      %v1097 = vpack.c.b16 %v1092, %v1091
      %v1098 = vpack.c.b16 %v1094, %v1093
      %v1100 = vsel %vm300, %v1095, 0
      %v1103 = vsel %vm300, %v1096, 0
      %v1106 = vsel %vm300, %v1097, 0
      %v1109 = vsel %vm300, %v1098, 0
      %v1112 = vsel %vm313, %v1086, 0
      %1114 = vmatprep.subr.bf16.mxu0 0
      %1115 = vmatpush1.bf16.msra.mxu0 0
      %1116 = vmatprep.subr.bf16.mxu0 0
      %1117 = vmatpush1.bf16.msra.mxu0 0
      %1118 = vmatprep.subr.bf16.mxu0 0
      %1119 = vmatpush1.bf16.msra.mxu0 0
      %1120 = vmatprep.subr.bf16.mxu0 0
      %1121 = vmatpush1.bf16.msra.mxu0 0
      %1122 = vmatprep.subr.bf16.mxu0 0
      %1123 = vmatpush1.bf16.msra.mxu0 0
      %1124 = vmatprep.subr.bf16.mxu0 0
      %1125 = vmatpush1.bf16.msra.mxu0 0
      %1126 = vmatprep.subr.bf16.mxu0 0
      %1127 = vmatpush1.bf16.msra.mxu0 0
      %1128 = vmatprep.subr.bf16.mxu0 0
      %1129 = vmatpush1.bf16.msra.mxu0 %v1112
      %1130 = vmatprep.subr.bf16.mxu0 0
      %1131 = vmatpush2.bf16.msra.mxu0 0
      %1132 = vmatprep.subr.bf16.mxu0 0
      %1133 = vmatpush2.bf16.msra.mxu0 0
      %1134 = vmatprep.subr.bf16.mxu0 0
      %1135 = vmatpush2.bf16.msra.mxu0 0
      %1136 = vmatprep.subr.bf16.mxu0 0
      %1137 = vmatpush2.bf16.msra.mxu0 0
      %1138 = vmatprep.subr.bf16.mxu0 0
      %1139 = vmatpush2.bf16.msra.mxu0 0
      %1140 = vmatprep.subr.bf16.mxu0 0
      %1141 = vmatpush2.bf16.msra.mxu0 0
      %1142 = vmatprep.subr.bf16.mxu0 0
      %1143 = vmatpush2.bf16.msra.mxu0 0
      %1144 = vmatprep.subr.bf16.mxu0 0
      %1145 = vmatpush2.bf16.msra.mxu0 0
      %1146 = vmatprep.mubr.bf16.mxu0 0
      %1147 = vmatmul.mubr.bf16.gmra.mxu0 %v1100
      %v1148 = vpop.f32.mrf.mxu0
      %v1149 = vadd.f32 0.0, %v1148
      %v1150 = vpop.f32.mrf.mxu0
      %v1151 = vpop.f32.mrf.mxu0
      %v1152 = vadd.f32 0.0, %v1151
      %v1153 = vpop.f32.mrf.mxu0
      %1154 = vmatprep.mubr.bf16.mxu0 0
      %1155 = vmatmul.mubr.bf16.gmra.mxu0 %v1103
      %v1156 = vpop.f32.mrf.mxu0
      %v1157 = vadd.f32 0.0, %v1156
      %v1158 = vpop.f32.mrf.mxu0
      %v1159 = vpop.f32.mrf.mxu0
      %v1160 = vadd.f32 0.0, %v1159
      %v1161 = vpop.f32.mrf.mxu0
      %1162 = vmatprep.mubr.bf16.mxu0 0
      %1163 = vmatmul.mubr.bf16.gmra.mxu0 %v1106
      %v1164 = vpop.f32.mrf.mxu0
      %v1165 = vadd.f32 0.0, %v1164
      %v1166 = vpop.f32.mrf.mxu0
      %v1167 = vpop.f32.mrf.mxu0
      %v1168 = vadd.f32 0.0, %v1167
      %v1169 = vpop.f32.mrf.mxu0
      %1170 = vmatprep.mubr.bf16.mxu0 0
      %1171 = vmatmul.mubr.bf16.gmra.mxu0 %v1109
      %v1172 = vpop.f32.mrf.mxu0
      %v1173 = vadd.f32 0.0, %v1172
      %v1174 = vpop.f32.mrf.mxu0
      %v1175 = vpop.f32.mrf.mxu0
      %v1176 = vadd.f32 0.0, %v1175
      %v1177 = vpop.f32.mrf.mxu0
      %1178 = vdwg.mxu0
      %v1179 = vadd.f32 %v949, %v1149
      %v1180 = vadd.f32 %v950, %v1152
      %v1181 = vadd.f32 %v951, %v1157
      %v1182 = vadd.f32 %v952, %v1160
      %v1183 = vadd.f32 %v953, %v1165
      %v1184 = vadd.f32 %v954, %v1168
      %v1185 = vadd.f32 %v955, %v1173
      %v1186 = vadd.f32 %v956, %v1176
      %s1187 = sadd.s32 %s254, 1
      %s1188 = smul.u32 %s1187, 2
      %s1189 = smul.addr %s1188, 4
      %s1190 = scalar_lea.vmem %s241, %s1189
      %v1191 = vld [vmem:[%s1190] sm:$0xf]
      %v1192 = vld [vmem:[%s1190 + $0x8] sm:$0xf]
      %v1193 = vld [vmem:[%s1190 + $0x10] sm:$0xf]
      %v1194 = vld [vmem:[%s1190 + $0x18] sm:$0xf]
      %v1195 = vld [vmem:[%s1190 + $0x20] sm:$0xf]
      %v1196 = vld [vmem:[%s1190 + $0x28] sm:$0xf]
      %v1197 = vld [vmem:[%s1190 + $0x30] sm:$0xf]
      %v1198 = vld [vmem:[%s1190 + $0x38] sm:$0xf]
      %s1199 = scalar_lea.vmem %s1, 12
      %v1200 = vld [vmem:[%s1199] sm:$0x3]
      %v1209 = vunpack.c.l.b16 %v1191
      %v1210 = vunpack.c.l.b16 %v1192
      %v1211 = vunpack.c.l.b16 %v1193
      %v1212 = vunpack.c.l.b16 %v1194
      %v1213 = vunpack.c.l.b16 %v1195
      %v1214 = vunpack.c.l.b16 %v1196
      %v1215 = vunpack.c.l.b16 %v1197
      %v1216 = vunpack.c.l.b16 %v1198
      %v1217 = vpack.c.b16 %v1210, %v1209
      %v1218 = vpack.c.b16 %v1212, %v1211
      %v1219 = vpack.c.b16 %v1214, %v1213
      %v1220 = vpack.c.b16 %v1216, %v1215
      %v1222 = vsel %vm300, %v1217, 0
      %v1225 = vsel %vm300, %v1218, 0
      %v1228 = vsel %vm300, %v1219, 0
      %v1231 = vsel %vm300, %v1220, 0
      %v1234 = vsel %vm313, %v1200, 0
      %1236 = vmatprep.subr.bf16.mxu0 0
      %1237 = vmatpush1.bf16.msra.mxu0 0
      %1238 = vmatprep.subr.bf16.mxu0 0
      %1239 = vmatpush1.bf16.msra.mxu0 0
      %1240 = vmatprep.subr.bf16.mxu0 0
      %1241 = vmatpush1.bf16.msra.mxu0 0
      %1242 = vmatprep.subr.bf16.mxu0 0
      %1243 = vmatpush1.bf16.msra.mxu0 0
      %1244 = vmatprep.subr.bf16.mxu0 0
      %1245 = vmatpush1.bf16.msra.mxu0 0
      %1246 = vmatprep.subr.bf16.mxu0 0
      %1247 = vmatpush1.bf16.msra.mxu0 0
      %1248 = vmatprep.subr.bf16.mxu0 0
      %1249 = vmatpush1.bf16.msra.mxu0 0
      %1250 = vmatprep.subr.bf16.mxu0 0
      %1251 = vmatpush1.bf16.msra.mxu0 %v1234
      %1252 = vmatprep.subr.bf16.mxu0 0
      %1253 = vmatpush2.bf16.msra.mxu0 0
      %1254 = vmatprep.subr.bf16.mxu0 0
      %1255 = vmatpush2.bf16.msra.mxu0 0
      %1256 = vmatprep.subr.bf16.mxu0 0
      %1257 = vmatpush2.bf16.msra.mxu0 0
      %1258 = vmatprep.subr.bf16.mxu0 0
      %1259 = vmatpush2.bf16.msra.mxu0 0
      %1260 = vmatprep.subr.bf16.mxu0 0
      %1261 = vmatpush2.bf16.msra.mxu0 0
      %1262 = vmatprep.subr.bf16.mxu0 0
      %1263 = vmatpush2.bf16.msra.mxu0 0
      %1264 = vmatprep.subr.bf16.mxu0 0
      %1265 = vmatpush2.bf16.msra.mxu0 0
      %1266 = vmatprep.subr.bf16.mxu0 0
      %1267 = vmatpush2.bf16.msra.mxu0 0
      %1268 = vmatprep.mubr.bf16.mxu0 0
      %1269 = vmatmul.mubr.bf16.gmra.mxu0 %v1222
      %v1270 = vpop.f32.mrf.mxu0
      %v1271 = vadd.f32 0.0, %v1270
      %v1272 = vpop.f32.mrf.mxu0
      %v1273 = vpop.f32.mrf.mxu0
      %v1274 = vadd.f32 0.0, %v1273
      %v1275 = vpop.f32.mrf.mxu0
      %1276 = vmatprep.mubr.bf16.mxu0 0
      %1277 = vmatmul.mubr.bf16.gmra.mxu0 %v1225
      %v1278 = vpop.f32.mrf.mxu0
      %v1279 = vadd.f32 0.0, %v1278
      %v1280 = vpop.f32.mrf.mxu0
      %v1281 = vpop.f32.mrf.mxu0
      %v1282 = vadd.f32 0.0, %v1281
      %v1283 = vpop.f32.mrf.mxu0
      %1284 = vmatprep.mubr.bf16.mxu0 0
      %1285 = vmatmul.mubr.bf16.gmra.mxu0 %v1228
      %v1286 = vpop.f32.mrf.mxu0
      %v1287 = vadd.f32 0.0, %v1286
      %v1288 = vpop.f32.mrf.mxu0
      %v1289 = vpop.f32.mrf.mxu0
      %v1290 = vadd.f32 0.0, %v1289
      %v1291 = vpop.f32.mrf.mxu0
      %1292 = vmatprep.mubr.bf16.mxu0 0
      %1293 = vmatmul.mubr.bf16.gmra.mxu0 %v1231
      %v1294 = vpop.f32.mrf.mxu0
      %v1295 = vadd.f32 0.0, %v1294
      %v1296 = vpop.f32.mrf.mxu0
      %v1297 = vpop.f32.mrf.mxu0
      %v1298 = vadd.f32 0.0, %v1297
      %v1299 = vpop.f32.mrf.mxu0
      %1300 = vdwg.mxu0
      %v1301 = vadd.f32 %v1179, %v1271
      %v1302 = vadd.f32 %v1180, %v1274
      %v1303 = vadd.f32 %v1181, %v1279
      %v1304 = vadd.f32 %v1182, %v1282
      %v1305 = vadd.f32 %v1183, %v1287
      %v1306 = vadd.f32 %v1184, %v1290
      %v1307 = vadd.f32 %v1185, %v1295
      %v1308 = vadd.f32 %v1186, %v1298
      %s1309 = sadd.s32 %s1188, 18
      %s1310 = smul.addr %s1309, 4
      %s1311 = scalar_lea.vmem %s241, %s1310
      %v1312 = vld [vmem:[%s1311] sm:$0xf]
      %v1313 = vld [vmem:[%s1311 + $0x8] sm:$0xf]
      %v1314 = vld [vmem:[%s1311 + $0x10] sm:$0xf]
      %v1315 = vld [vmem:[%s1311 + $0x18] sm:$0xf]
      %v1316 = vld [vmem:[%s1311 + $0x20] sm:$0xf]
      %v1317 = vld [vmem:[%s1311 + $0x28] sm:$0xf]
      %v1318 = vld [vmem:[%s1311 + $0x30] sm:$0xf]
      %v1319 = vld [vmem:[%s1311 + $0x38] sm:$0xf]
      %s1320 = scalar_lea.vmem %s1, 14
      %v1321 = vld [vmem:[%s1320] sm:$0x3]
      %v1330 = vunpack.c.l.b16 %v1312
      %v1331 = vunpack.c.l.b16 %v1313
      %v1332 = vunpack.c.l.b16 %v1314
      %v1333 = vunpack.c.l.b16 %v1315
      %v1334 = vunpack.c.l.b16 %v1316
      %v1335 = vunpack.c.l.b16 %v1317
      %v1336 = vunpack.c.l.b16 %v1318
      %v1337 = vunpack.c.l.b16 %v1319
      %v1338 = vpack.c.b16 %v1331, %v1330
      %v1339 = vpack.c.b16 %v1333, %v1332
      %v1340 = vpack.c.b16 %v1335, %v1334
      %v1341 = vpack.c.b16 %v1337, %v1336
      %v1343 = vsel %vm300, %v1338, 0
      %v1346 = vsel %vm300, %v1339, 0
      %v1349 = vsel %vm300, %v1340, 0
      %v1352 = vsel %vm300, %v1341, 0
      %v1355 = vsel %vm313, %v1321, 0
      %1357 = vmatprep.subr.bf16.mxu0 0
      %1358 = vmatpush1.bf16.msra.mxu0 0
      %1359 = vmatprep.subr.bf16.mxu0 0
      %1360 = vmatpush1.bf16.msra.mxu0 0
      %1361 = vmatprep.subr.bf16.mxu0 0
      %1362 = vmatpush1.bf16.msra.mxu0 0
      %1363 = vmatprep.subr.bf16.mxu0 0
      %1364 = vmatpush1.bf16.msra.mxu0 0
      %1365 = vmatprep.subr.bf16.mxu0 0
      %1366 = vmatpush1.bf16.msra.mxu0 0
      %1367 = vmatprep.subr.bf16.mxu0 0
      %1368 = vmatpush1.bf16.msra.mxu0 0
      %1369 = vmatprep.subr.bf16.mxu0 0
      %1370 = vmatpush1.bf16.msra.mxu0 0
      %1371 = vmatprep.subr.bf16.mxu0 0
      %1372 = vmatpush1.bf16.msra.mxu0 %v1355
      %1373 = vmatprep.subr.bf16.mxu0 0
      %1374 = vmatpush2.bf16.msra.mxu0 0
      %1375 = vmatprep.subr.bf16.mxu0 0
      %1376 = vmatpush2.bf16.msra.mxu0 0
      %1377 = vmatprep.subr.bf16.mxu0 0
      %1378 = vmatpush2.bf16.msra.mxu0 0
      %1379 = vmatprep.subr.bf16.mxu0 0
      %1380 = vmatpush2.bf16.msra.mxu0 0
      %1381 = vmatprep.subr.bf16.mxu0 0
      %1382 = vmatpush2.bf16.msra.mxu0 0
      %1383 = vmatprep.subr.bf16.mxu0 0
      %1384 = vmatpush2.bf16.msra.mxu0 0
      %1385 = vmatprep.subr.bf16.mxu0 0
      %1386 = vmatpush2.bf16.msra.mxu0 0
      %1387 = vmatprep.subr.bf16.mxu0 0
      %1388 = vmatpush2.bf16.msra.mxu0 0
      %1389 = vmatprep.mubr.bf16.mxu0 0
      %1390 = vmatmul.mubr.bf16.gmra.mxu0 %v1343
      %v1391 = vpop.f32.mrf.mxu0
      %v1392 = vadd.f32 0.0, %v1391
      %v1393 = vpop.f32.mrf.mxu0
      %v1394 = vpop.f32.mrf.mxu0
      %v1395 = vadd.f32 0.0, %v1394
      %v1396 = vpop.f32.mrf.mxu0
      %1397 = vmatprep.mubr.bf16.mxu0 0
      %1398 = vmatmul.mubr.bf16.gmra.mxu0 %v1346
      %v1399 = vpop.f32.mrf.mxu0
      %v1400 = vadd.f32 0.0, %v1399
      %v1401 = vpop.f32.mrf.mxu0
      %v1402 = vpop.f32.mrf.mxu0
      %v1403 = vadd.f32 0.0, %v1402
      %v1404 = vpop.f32.mrf.mxu0
      %1405 = vmatprep.mubr.bf16.mxu0 0
      %1406 = vmatmul.mubr.bf16.gmra.mxu0 %v1349
      %v1407 = vpop.f32.mrf.mxu0
      %v1408 = vadd.f32 0.0, %v1407
      %v1409 = vpop.f32.mrf.mxu0
      %v1410 = vpop.f32.mrf.mxu0
      %v1411 = vadd.f32 0.0, %v1410
      %v1412 = vpop.f32.mrf.mxu0
      %1413 = vmatprep.mubr.bf16.mxu0 0
      %1414 = vmatmul.mubr.bf16.gmra.mxu0 %v1352
      %v1415 = vpop.f32.mrf.mxu0
      %v1416 = vadd.f32 0.0, %v1415
      %v1417 = vpop.f32.mrf.mxu0
      %v1418 = vpop.f32.mrf.mxu0
      %v1419 = vadd.f32 0.0, %v1418
      %v1420 = vpop.f32.mrf.mxu0
      %1421 = vdwg.mxu0
      %v1422 = vadd.f32 %v1301, %v1392
      %v1423 = vadd.f32 %v1302, %v1395
      %v1424 = vadd.f32 %v1303, %v1400
      %v1425 = vadd.f32 %v1304, %v1403
      %v1426 = vadd.f32 %v1305, %v1408
      %v1427 = vadd.f32 %v1306, %v1411
      %v1428 = vadd.f32 %v1307, %v1416
      %v1429 = vadd.f32 %v1308, %v1419
      %v1430 = vld [vmem:[%s1190] sm:$0xf]
      %v1431 = vld [vmem:[%s1190 + $0x4] sm:$0x1]
      %v1432 = vld [vmem:[%s1190 + $0x8] sm:$0xf]
      %v1433 = vld [vmem:[%s1190 + $0xc] sm:$0x1]
      %v1434 = vld [vmem:[%s1190 + $0x10] sm:$0xf]
      %v1435 = vld [vmem:[%s1190 + $0x14] sm:$0x1]
      %v1436 = vld [vmem:[%s1190 + $0x18] sm:$0xf]
      %v1437 = vld [vmem:[%s1190 + $0x1c] sm:$0x1]
      %v1438 = vld [vmem:[%s1190 + $0x20] sm:$0xf]
      %v1439 = vld [vmem:[%s1190 + $0x24] sm:$0x1]
      %v1440 = vld [vmem:[%s1190 + $0x28] sm:$0xf]
      %v1441 = vld [vmem:[%s1190 + $0x2c] sm:$0x1]
      %v1442 = vld [vmem:[%s1190 + $0x30] sm:$0xf]
      %v1443 = vld [vmem:[%s1190 + $0x34] sm:$0x1]
      %v1444 = vld [vmem:[%s1190 + $0x38] sm:$0xf]
      %v1445 = vld [vmem:[%s1190 + $0x3c] sm:$0x1]
      %v1447 = vshrl.u32 %v1430, 16
      %v1449 = vrot.slane %v1447, 4
      %v1450 = vshll.u32 %v1430, 16
      %v1452 = vrot.slane %v1450, 5
      %v1453 = vor.u32 %v1449, %v1452
      %v1454 = vrot.slane %v1453, 4
      %v1456 = vshll.u32 %v1431, 16
      %v1458 = vrot.slane %v1456, 5
      %v1459 = vsel %vm500, %v1454, %v1458
      %v1461 = vshrl.u32 %v1432, 16
      %v1463 = vrot.slane %v1461, 4
      %v1464 = vshll.u32 %v1432, 16
      %v1466 = vrot.slane %v1464, 5
      %v1467 = vor.u32 %v1463, %v1466
      %v1468 = vrot.slane %v1467, 4
      %v1470 = vshll.u32 %v1433, 16
      %v1472 = vrot.slane %v1470, 5
      %v1473 = vsel %vm500, %v1468, %v1472
      %v1475 = vshrl.u32 %v1434, 16
      %v1477 = vrot.slane %v1475, 4
      %v1478 = vshll.u32 %v1434, 16
      %v1480 = vrot.slane %v1478, 5
      %v1481 = vor.u32 %v1477, %v1480
      %v1482 = vrot.slane %v1481, 4
      %v1484 = vshll.u32 %v1435, 16
      %v1486 = vrot.slane %v1484, 5
      %v1487 = vsel %vm500, %v1482, %v1486
      %v1489 = vshrl.u32 %v1436, 16
      %v1491 = vrot.slane %v1489, 4
      %v1492 = vshll.u32 %v1436, 16
      %v1494 = vrot.slane %v1492, 5
      %v1495 = vor.u32 %v1491, %v1494
      %v1496 = vrot.slane %v1495, 4
      %v1498 = vshll.u32 %v1437, 16
      %v1500 = vrot.slane %v1498, 5
      %v1501 = vsel %vm500, %v1496, %v1500
      %v1503 = vshrl.u32 %v1438, 16
      %v1505 = vrot.slane %v1503, 4
      %v1506 = vshll.u32 %v1438, 16
      %v1508 = vrot.slane %v1506, 5
      %v1509 = vor.u32 %v1505, %v1508
      %v1510 = vrot.slane %v1509, 4
      %v1512 = vshll.u32 %v1439, 16
      %v1514 = vrot.slane %v1512, 5
      %v1515 = vsel %vm500, %v1510, %v1514
      %v1517 = vshrl.u32 %v1440, 16
      %v1519 = vrot.slane %v1517, 4
      %v1520 = vshll.u32 %v1440, 16
      %v1522 = vrot.slane %v1520, 5
      %v1523 = vor.u32 %v1519, %v1522
      %v1524 = vrot.slane %v1523, 4
      %v1526 = vshll.u32 %v1441, 16
      %v1528 = vrot.slane %v1526, 5
      %v1529 = vsel %vm500, %v1524, %v1528
      %v1531 = vshrl.u32 %v1442, 16
      %v1533 = vrot.slane %v1531, 4
      %v1534 = vshll.u32 %v1442, 16
      %v1536 = vrot.slane %v1534, 5
      %v1537 = vor.u32 %v1533, %v1536
      %v1538 = vrot.slane %v1537, 4
      %v1540 = vshll.u32 %v1443, 16
      %v1542 = vrot.slane %v1540, 5
      %v1543 = vsel %vm500, %v1538, %v1542
      %v1545 = vshrl.u32 %v1444, 16
      %v1547 = vrot.slane %v1545, 4
      %v1548 = vshll.u32 %v1444, 16
      %v1550 = vrot.slane %v1548, 5
      %v1551 = vor.u32 %v1547, %v1550
      %v1552 = vrot.slane %v1551, 4
      %v1554 = vshll.u32 %v1445, 16
      %v1556 = vrot.slane %v1554, 5
      %v1557 = vsel %vm500, %v1552, %v1556
      %s1558 = scalar_lea.vmem %s1, 16
      %v1559 = vld [vmem:[%s1558] sm:$0x3]
      %v1560 = vunpack.c.l.b16 %v1459
      %v1561 = vunpack.c.l.b16 %v1473
      %v1562 = vunpack.c.l.b16 %v1487
      %v1563 = vunpack.c.l.b16 %v1501
      %v1564 = vunpack.c.l.b16 %v1515
      %v1565 = vunpack.c.l.b16 %v1529
      %v1566 = vunpack.c.l.b16 %v1543
      %v1567 = vunpack.c.l.b16 %v1557
      %v1568 = vpack.c.b16 %v1561, %v1560
      %v1569 = vpack.c.b16 %v1563, %v1562
      %v1570 = vpack.c.b16 %v1565, %v1564
      %v1571 = vpack.c.b16 %v1567, %v1566
      %v1573 = vsel %vm300, %v1568, 0
      %v1576 = vsel %vm300, %v1569, 0
      %v1579 = vsel %vm300, %v1570, 0
      %v1582 = vsel %vm300, %v1571, 0
      %v1585 = vsel %vm313, %v1559, 0
      %1587 = vmatprep.subr.bf16.mxu0 0
      %1588 = vmatpush1.bf16.msra.mxu0 0
      %1589 = vmatprep.subr.bf16.mxu0 0
      %1590 = vmatpush1.bf16.msra.mxu0 0
      %1591 = vmatprep.subr.bf16.mxu0 0
      %1592 = vmatpush1.bf16.msra.mxu0 0
      %1593 = vmatprep.subr.bf16.mxu0 0
      %1594 = vmatpush1.bf16.msra.mxu0 0
      %1595 = vmatprep.subr.bf16.mxu0 0
      %1596 = vmatpush1.bf16.msra.mxu0 0
      %1597 = vmatprep.subr.bf16.mxu0 0
      %1598 = vmatpush1.bf16.msra.mxu0 0
      %1599 = vmatprep.subr.bf16.mxu0 0
      %1600 = vmatpush1.bf16.msra.mxu0 0
      %1601 = vmatprep.subr.bf16.mxu0 0
      %1602 = vmatpush1.bf16.msra.mxu0 %v1585
      %1603 = vmatprep.subr.bf16.mxu0 0
      %1604 = vmatpush2.bf16.msra.mxu0 0
      %1605 = vmatprep.subr.bf16.mxu0 0
      %1606 = vmatpush2.bf16.msra.mxu0 0
      %1607 = vmatprep.subr.bf16.mxu0 0
      %1608 = vmatpush2.bf16.msra.mxu0 0
      %1609 = vmatprep.subr.bf16.mxu0 0
      %1610 = vmatpush2.bf16.msra.mxu0 0
      %1611 = vmatprep.subr.bf16.mxu0 0
      %1612 = vmatpush2.bf16.msra.mxu0 0
      %1613 = vmatprep.subr.bf16.mxu0 0
      %1614 = vmatpush2.bf16.msra.mxu0 0
      %1615 = vmatprep.subr.bf16.mxu0 0
      %1616 = vmatpush2.bf16.msra.mxu0 0
      %1617 = vmatprep.subr.bf16.mxu0 0
      %1618 = vmatpush2.bf16.msra.mxu0 0
      %1619 = vmatprep.mubr.bf16.mxu0 0
      %1620 = vmatmul.mubr.bf16.gmra.mxu0 %v1573
      %v1621 = vpop.f32.mrf.mxu0
      %v1622 = vadd.f32 0.0, %v1621
      %v1623 = vpop.f32.mrf.mxu0
      %v1624 = vpop.f32.mrf.mxu0
      %v1625 = vadd.f32 0.0, %v1624
      %v1626 = vpop.f32.mrf.mxu0
      %1627 = vmatprep.mubr.bf16.mxu0 0
      %1628 = vmatmul.mubr.bf16.gmra.mxu0 %v1576
      %v1629 = vpop.f32.mrf.mxu0
      %v1630 = vadd.f32 0.0, %v1629
      %v1631 = vpop.f32.mrf.mxu0
      %v1632 = vpop.f32.mrf.mxu0
      %v1633 = vadd.f32 0.0, %v1632
      %v1634 = vpop.f32.mrf.mxu0
      %1635 = vmatprep.mubr.bf16.mxu0 0
      %1636 = vmatmul.mubr.bf16.gmra.mxu0 %v1579
      %v1637 = vpop.f32.mrf.mxu0
      %v1638 = vadd.f32 0.0, %v1637
      %v1639 = vpop.f32.mrf.mxu0
      %v1640 = vpop.f32.mrf.mxu0
      %v1641 = vadd.f32 0.0, %v1640
      %v1642 = vpop.f32.mrf.mxu0
      %1643 = vmatprep.mubr.bf16.mxu0 0
      %1644 = vmatmul.mubr.bf16.gmra.mxu0 %v1582
      %v1645 = vpop.f32.mrf.mxu0
      %v1646 = vadd.f32 0.0, %v1645
      %v1647 = vpop.f32.mrf.mxu0
      %v1648 = vpop.f32.mrf.mxu0
      %v1649 = vadd.f32 0.0, %v1648
      %v1650 = vpop.f32.mrf.mxu0
      %1651 = vdwg.mxu0
      %v1652 = vadd.f32 %v1422, %v1622
      %v1653 = vadd.f32 %v1423, %v1625
      %v1654 = vadd.f32 %v1424, %v1630
      %v1655 = vadd.f32 %v1425, %v1633
      %v1656 = vadd.f32 %v1426, %v1638
      %v1657 = vadd.f32 %v1427, %v1641
      %v1658 = vadd.f32 %v1428, %v1646
      %v1659 = vadd.f32 %v1429, %v1649
      %v1660 = vld [vmem:[%s2] sm:$0x1]
      %v1662 = vlaneseq
      %v1663 = vshrl.u32 %v1662, 7
      %v1664 = vsub.s32 0, %v1663
      %v1665 = vrot.slane %v1660, %v1664
      %v1667 = vadd.f32 %v1652, %v1665
      %v1668 = vadd.f32 %v1653, %v1665
      %v1669 = vadd.f32 %v1654, %v1665
      %v1670 = vadd.f32 %v1655, %v1665
      %v1671 = vadd.f32 %v1656, %v1665
      %v1672 = vadd.f32 %v1657, %v1665
      %v1673 = vadd.f32 %v1658, %v1665
      %v1674 = vadd.f32 %v1659, %v1665
      %1675 = vadd.xlane.f32.xlu0 %v1667
      %v1676 = vpop.xlane.xlu0 %1675
      %1677 = vadd.xlane.f32.xlu0 %v1668
      %v1678 = vpop.xlane.xlu0 %1677
      %1679 = vadd.xlane.f32.xlu0 %v1669
      %v1680 = vpop.xlane.xlu0 %1679
      %1681 = vadd.xlane.f32.xlu0 %v1670
      %v1682 = vpop.xlane.xlu0 %1681
      %1683 = vadd.xlane.f32.xlu0 %v1671
      %v1684 = vpop.xlane.xlu0 %1683
      %1685 = vadd.xlane.f32.xlu0 %v1672
      %v1686 = vpop.xlane.xlu0 %1685
      %1687 = vadd.xlane.f32.xlu0 %v1673
      %v1688 = vpop.xlane.xlu0 %1687
      %1689 = vadd.xlane.f32.xlu0 %v1674
      %v1690 = vpop.xlane.xlu0 %1689
      %v1691 = vmul.f32 %v1676, 0.125
      %v1692 = vmul.f32 %v1678, 0.125
      %v1693 = vmul.f32 %v1680, 0.125
      %v1694 = vmul.f32 %v1682, 0.125
      %v1695 = vmul.f32 %v1684, 0.125
      %v1696 = vmul.f32 %v1686, 0.125
      %v1697 = vmul.f32 %v1688, 0.125
      %v1698 = vmul.f32 %v1690, 0.125
      %v1699 = vmul.f32 %v1667, %v1667
      %v1700 = vmul.f32 %v1668, %v1668
      %v1701 = vmul.f32 %v1669, %v1669
      %v1702 = vmul.f32 %v1670, %v1670
      %v1703 = vmul.f32 %v1671, %v1671
      %v1704 = vmul.f32 %v1672, %v1672
      %v1705 = vmul.f32 %v1673, %v1673
      %v1706 = vmul.f32 %v1674, %v1674
      %1707 = vadd.xlane.f32.xlu0 %v1699
      %v1708 = vpop.xlane.xlu0 %1707
      %1709 = vadd.xlane.f32.xlu0 %v1700
      %v1710 = vpop.xlane.xlu0 %1709
      %1711 = vadd.xlane.f32.xlu0 %v1701
      %v1712 = vpop.xlane.xlu0 %1711
      %1713 = vadd.xlane.f32.xlu0 %v1702
      %v1714 = vpop.xlane.xlu0 %1713
      %1715 = vadd.xlane.f32.xlu0 %v1703
      %v1716 = vpop.xlane.xlu0 %1715
      %1717 = vadd.xlane.f32.xlu0 %v1704
      %v1718 = vpop.xlane.xlu0 %1717
      %1719 = vadd.xlane.f32.xlu0 %v1705
      %v1720 = vpop.xlane.xlu0 %1719
      %1721 = vadd.xlane.f32.xlu0 %v1706
      %v1722 = vpop.xlane.xlu0 %1721
      %v1723 = vmul.f32 %v1708, 0.125
      %v1724 = vmul.f32 %v1710, 0.125
      %v1725 = vmul.f32 %v1712, 0.125
      %v1726 = vmul.f32 %v1714, 0.125
      %v1727 = vmul.f32 %v1716, 0.125
      %v1728 = vmul.f32 %v1718, 0.125
      %v1729 = vmul.f32 %v1720, 0.125
      %v1730 = vmul.f32 %v1722, 0.125
      %v1731 = vmul.f32 %v1691, %v1691
      %v1732 = vmul.f32 %v1692, %v1692
      %v1733 = vmul.f32 %v1693, %v1693
      %v1734 = vmul.f32 %v1694, %v1694
      %v1735 = vmul.f32 %v1695, %v1695
      %v1736 = vmul.f32 %v1696, %v1696
      %v1737 = vmul.f32 %v1697, %v1697
      %v1738 = vmul.f32 %v1698, %v1698
      %v1739 = vsub.f32 %v1723, %v1731
      %v1740 = vsub.f32 %v1724, %v1732
      %v1741 = vsub.f32 %v1725, %v1733
      %v1742 = vsub.f32 %v1726, %v1734
      %v1743 = vsub.f32 %v1727, %v1735
      %v1744 = vsub.f32 %v1728, %v1736
      %v1745 = vsub.f32 %v1729, %v1737
      %v1746 = vsub.f32 %v1730, %v1738
      %v1747 = vadd.f32 %v1739, 1e-05
      %v1748 = vadd.f32 %v1740, 1e-05
      %v1749 = vadd.f32 %v1741, 1e-05
      %v1750 = vadd.f32 %v1742, 1e-05
      %v1751 = vadd.f32 %v1743, 1e-05
      %v1752 = vadd.f32 %v1744, 1e-05
      %v1753 = vadd.f32 %v1745, 1e-05
      %v1754 = vadd.f32 %v1746, 1e-05
      %v1755 = vrsqrt.pop %v1747
      %v1756 = vrsqrt.pop %v1748
      %v1757 = vrsqrt.pop %v1749
      %v1758 = vrsqrt.pop %v1750
      %v1759 = vrsqrt.pop %v1751
      %v1760 = vrsqrt.pop %v1752
      %v1761 = vrsqrt.pop %v1753
      %v1762 = vrsqrt.pop %v1754
      %v1763 = vld [vmem:[%s3] sm:$0x1]
      %v1765 = vlaneseq
      %v1766 = vshrl.u32 %v1765, 7
      %v1767 = vsub.s32 0, %v1766
      %v1768 = vrot.slane %v1763, %v1767
      %v1770 = vmul.f32 %v1755, %v1768
      %v1771 = vmul.f32 %v1756, %v1768
      %v1772 = vmul.f32 %v1757, %v1768
      %v1773 = vmul.f32 %v1758, %v1768
      %v1774 = vmul.f32 %v1759, %v1768
      %v1775 = vmul.f32 %v1760, %v1768
      %v1776 = vmul.f32 %v1761, %v1768
      %v1777 = vmul.f32 %v1762, %v1768
      %v1778 = vsub.f32 %v1667, %v1691
      %v1779 = vsub.f32 %v1668, %v1692
      %v1780 = vsub.f32 %v1669, %v1693
      %v1781 = vsub.f32 %v1670, %v1694
      %v1782 = vsub.f32 %v1671, %v1695
      %v1783 = vsub.f32 %v1672, %v1696
      %v1784 = vsub.f32 %v1673, %v1697
      %v1785 = vsub.f32 %v1674, %v1698
      %v1786 = vmul.f32 %v1778, %v1770
      %v1787 = vmul.f32 %v1779, %v1771
      %v1788 = vmul.f32 %v1780, %v1772
      %v1789 = vmul.f32 %v1781, %v1773
      %v1790 = vmul.f32 %v1782, %v1774
      %v1791 = vmul.f32 %v1783, %v1775
      %v1792 = vmul.f32 %v1784, %v1776
      %v1793 = vmul.f32 %v1785, %v1777
      %v1794 = vld [vmem:[%s4] sm:$0x1]
      %v1796 = vlaneseq
      %v1797 = vshrl.u32 %v1796, 7
      %v1798 = vsub.s32 0, %v1797
      %v1799 = vrot.slane %v1794, %v1798
      %v1801 = vadd.f32 %v1786, %v1799
      %v1802 = vadd.f32 %v1787, %v1799
      %v1803 = vadd.f32 %v1788, %v1799
      %v1804 = vadd.f32 %v1789, %v1799
      %v1805 = vadd.f32 %v1790, %v1799
      %v1806 = vadd.f32 %v1791, %v1799
      %v1807 = vadd.f32 %v1792, %v1799
      %v1808 = vadd.f32 %v1793, %v1799
      %1809 = vst [vmem:[%s251] sm:$0xff] %v1801
      %1810 = vst [vmem:[%s251 + $0x8] sm:$0xff] %v1802
      %1811 = vst [vmem:[%s251 + $0x10] sm:$0xff] %v1803
      %1812 = vst [vmem:[%s251 + $0x18] sm:$0xff] %v1804
      %1813 = vst [vmem:[%s251 + $0x20] sm:$0xff] %v1805
      %1814 = vst [vmem:[%s251 + $0x28] sm:$0xff] %v1806
      %1815 = vst [vmem:[%s251 + $0x30] sm:$0xff] %v1807
      %1816 = vst [vmem:[%s251 + $0x38] sm:$0xff] %v1808
      %s1817 = smul.u32 8, %s21
      %p1818 = scmp.lt.s32.totalorder %s20, 1
      %s1819 = scalar_select %p1818, %s20, 1
      %p1820 = scmp.lt.s32.totalorder %s1817, 7
      %s1821 = scalar_select %p1820, %s1817, 7
      %s1822 = smul.addr %s1819, 8
      %s1823 = sadd.s32 %s1821, %s1822
      %s1824 = smul.addr %s1823, 8
      %s1825 = scalar_lea.vmem %s5, %s1824
      // Predicated region
      $region41: #{merge_block_forward.1} parent=39 // pred_check
        %p1826 = pneg %p158
      $region42: #{merge_block_forward.1} parent=39 // pred_check_branch
        %1828 = sbr.rel (%p1826) target = $region44
      $region43: #{merge_block_forward.1} parent=39 // pred_region
        %s1829 = smul.u32 8, %s21
      $region44: #{merge_block_forward.1} parent=39 // pred_fallthru
        _
    $region40: #{merge_block_forward.1} parent=5 // pred_fallthru
      _
    %p1830 = scmp.le.s32.totalorder 2, %s11
    // Predicated region
    $region45: #{merge_block_forward.1} parent=5 // pred_check
      %p1831 = pneg %p1830
    $region46: #{merge_block_forward.1} parent=5 // pred_check_branch
      %1833 = sbr.rel (%p1831) target = $region48
    $region47: #{merge_block_forward.1} parent=5 // pred_region
      %s1834 = ssub.s32 %s11, 2
      // Predicated region
      $region49: #{merge_block_forward.1} parent=47 // pred_check
        %p1835 = pneg %p164
      $region50: #{merge_block_forward.1} parent=47 // pred_check_branch
        %1837 = sbr.rel (%p1835) target = $region52
      $region51: #{merge_block_forward.1} parent=47 // pred_region
        %s1838 = smul.u32 8, %s23
        %p1839 = scmp.lt.s32.totalorder %s22, 1
        %s1840 = scalar_select %p1839, %s22, 1
        %p1841 = scmp.lt.s32.totalorder %s1838, 7
        %s1842 = scalar_select %p1841, %s1838, 7
        %s1843 = smul.addr %s1840, 8
        %s1844 = sadd.s32 %s1842, %s1843
        %s1845 = smul.addr %s1844, 8
        %s1846 = scalar_lea.vmem %s5, %s1845
      $region52: #{merge_block_forward.1} parent=47 // pred_fallthru
        _
    $region48: #{merge_block_forward.1} parent=5 // pred_fallthru
      _
  $region6: #{merge_block_forward.1} parent=0 // loop_footer
    %s15 = sadd.s32 1, %s11
  $region7: #{merge_block_forward.1} parent=0 // loop_footer_branch
    %10 = sbr.rel target = $region3
  $region8: #{merge_block_forward.1} parent=0 // loop_exit
    _

</llo_original>
